<compile_context>
chip_gen: v5e
topology: v5e:2x2
jax: 0.10.0
libtpu: 0.0.40
codegen_flags: <defaults>
</compile_context>

<pallas_src>
import functools

import jax
import jax.numpy as jnp
import numpy as np
from jax.experimental import pallas as pl
from jax.experimental.pallas import tpu as pltpu


KSIZE = 7
PAD = KSIZE // 2


def _make_divisible(v, divisor, min_value=None):
    if min_value is None:
        min_value = divisor
    new_v = max(min_value, int(v + divisor / 2) // divisor * divisor)
    if new_v < 0.9 * v:
        new_v += divisor
    return new_v


def _cbam_kernel(x_ref, w1_ref, w2_ref, mask_ref, wc_ref, o_ref, pad_ref, *, H, W):
    # x_ref : (1, C, H*W) block (lane-dense), native dtype
    # w1_ref: (S, C) f32; w2_ref: (C, S) f32
    # mask_ref: (7, H*W) f32 — per-dw column validity masks
    # wc_ref: (2*49,) f32 in SMEM — conv taps, [avg taps | max taps]
    # pad_ref: (2, 1, LP) f32 VMEM scratch — zero-padded flat spatial maps
    HW = H * W
    OFF = PAD * W + PAD            # flat offset of the map inside the padded row

    x_nat = x_ref[0]                               # (C, HW) native dtype
    x_f32 = x_nat.astype(jnp.float32)

    # ---- Channel attention: single lane-axis reduces + shared MLP on MXU ----
    avg_c = jnp.mean(x_f32, axis=1, keepdims=True)            # (C, 1)
    max_c = jnp.max(x_f32, axis=1, keepdims=True)              # (C, 1)
    pooled = jnp.concatenate([avg_c, max_c], axis=1)           # (C, 2)

    h = jnp.maximum(
        jnp.dot(w1_ref[...].astype(jnp.float32), pooled,
                preferred_element_type=jnp.float32), 0.0)      # (S, 2)
    mlp = jnp.dot(w2_ref[...].astype(jnp.float32), h,
                  preferred_element_type=jnp.float32)          # (C, 2)
    ca = jax.nn.sigmoid(mlp[:, 0:1] + mlp[:, 1:2])             # (C, 1)

    # Bulk channel scale in the input's native dtype (bf16 stays packed).
    xs = x_nat * ca.astype(x_nat.dtype)                        # (C, HW)

    # ---- Spatial attention: flat lane-dense maps + VMEM-scratch conv -------
    xs_f32 = xs.astype(jnp.float32)
    avg_s = jnp.mean(xs_f32, axis=0, keepdims=True)            # (1, HW)
    max_s = jnp.max(xs_f32, axis=0, keepdims=True)             # (1, HW)

    pad_ref[...] = jnp.zeros_like(pad_ref)                     # zero pads (cheap)
    pad_ref[0, :, pl.ds(OFF, HW)] = avg_s
    pad_ref[1, :, pl.ds(OFF, HW)] = max_s

    # Unrolled 7x7 conv (2 -> 1 channel) in the flat domain.
    # Tap (dh, dw) window == padded row sliced at static offset dh*W + dw.
    # Vertical OOB taps read the zero pads; horizontal OOB taps are masked.
    # 4 independent partial accumulators break the VALU dependency chain.
    acc = [jnp.zeros((1, HW), jnp.float32) for _ in range(4)]
    for dw in range(KSIZE):
        m_dw = mask_ref[dw:dw + 1, :]                          # (1, HW)
        for dh in range(KSIZE):
            s = dh * W + dw
            a_win = pad_ref[0, :, pl.ds(s, HW)]                # (1, HW) vld
            m_win = pad_ref[1, :, pl.ds(s, HW)]                # (1, HW) vld
            wa = wc_ref[dh * KSIZE + dw]                       # avg-map tap
            wm = wc_ref[KSIZE * KSIZE + dh * KSIZE + dw]       # max-map tap
            k = (dh & 1) * 2 + (dw & 1)
            acc[k] = acc[k] + m_dw * (wa * a_win + wm * m_win)

    sa = jax.nn.sigmoid((acc[0] + acc[1]) + (acc[2] + acc[3]))  # (1, HW)

    # Final scale + store, lane-dense and in native dtype.
    o_ref[0] = (xs * sa.astype(xs.dtype)).astype(o_ref.dtype)


def cbam_pallas(x, w1, w2, wconv):
    """CBAM forward. x: (N, C, H, W) -> (N, C, H, W)."""
    N, C, H, W = x.shape
    S = w1.shape[0]
    HW = H * W
    # Padded flat map length: PAD*W+PAD zeros on each side, rounded to lanes.
    LP = ((HW + 2 * (PAD * W + PAD) + 127) // 128) * 128

    x2 = x.reshape(N, C, HW)                               # free for contiguous NCHW
    wc_flat = wconv.reshape(-1).astype(jnp.float32)        # (98,) scalar SMEM taps

    # Per-dw column-validity masks for the flat-domain conv (tap (dh,dw) is
    # valid at output column w iff 0 <= w + dw - PAD < W).
    col = np.arange(W)
    masks_np = np.zeros((KSIZE, HW), np.float32)
    for dw in range(KSIZE):
        d = dw - PAD
        valid = ((col + d >= 0) & (col + d < W)).astype(np.float32)
        masks_np[dw] = np.tile(valid, H)
    masks = jnp.asarray(masks_np)

    # f32-aware VMEM budget: double-buffered I/O blocks + in-kernel f32 copies
    # + conv scratch + small weights/masks + headroom, capped by device VMEM.
    io_bytes = 2 * 2 * C * HW * x.dtype.itemsize           # in + out, double-buffered
    f32_work = 4 * C * HW * 4                               # x_f32 / xs / xs_f32 + slack
    scratch_bytes = 2 * 8 * LP * 4                          # padded-map scratch (sublane pad)
    small = 2 * (S * C + C * S + KSIZE * HW + 128) * 4
    need = io_bytes + f32_work + scratch_bytes + small + (4 << 20)
    try:
        cap = int(pltpu.get_tpu_info().vmem_capacity_bytes)
    except Exception:  # pragma: no cover - conservative fallback
        cap = 64 * 1024 * 1024
    vmem_limit = int(min(max(need, 32 * 1024 * 1024), int(cap * 0.85)))

    out2 = pl.pallas_call(
        functools.partial(_cbam_kernel, H=H, W=W),
        out_shape=jax.ShapeDtypeStruct((N, C, HW), x.dtype),
        grid_spec=pltpu.PrefetchScalarGridSpec(
            num_scalar_prefetch=0,
            grid=(N,),
            in_specs=[
                pl.BlockSpec((1, C, HW), lambda n: (n, 0, 0)),   # x (lane-dense)
                pl.BlockSpec((S, C), lambda n: (0, 0)),          # fc[0] weight
                pl.BlockSpec((C, S), lambda n: (0, 0)),          # fc[2] weight
                pl.BlockSpec((KSIZE, HW), lambda n: (0, 0)),     # column masks
                pl.BlockSpec(memory_space=pltpu.MemorySpace.SMEM),  # conv taps
            ],
            out_specs=pl.BlockSpec((1, C, HW), lambda n: (n, 0, 0)),
            scratch_shapes=[pltpu.VMEM((2, 1, LP), jnp.float32)],
        ),
        compiler_params=pltpu.CompilerParams(
            dimension_semantics=("parallel",),
            vmem_limit_bytes=vmem_limit),
    )(x2, w1, w2, masks, wc_flat)

    return out2.reshape(N, C, H, W)


def cbam_reference(x, w1, w2, wconv):
    """Pure-JAX NCHW reference matching the PyTorch module semantics."""
    N, C, H, W = x.shape
    avg = jnp.mean(x, axis=(2, 3))                 # (N, C)
    mx = jnp.max(x, axis=(2, 3))                   # (N, C)

    def fc(v):  # (N, C) -> (N, C)
        h = jnp.maximum(jnp.sum(v[:, None, :] * w1[None, :, :], axis=2), 0.0)  # (N, S)
        return jnp.sum(h[:, None, :] * w2[None, :, :], axis=2)                 # (N, C)

    ca = jax.nn.sigmoid(fc(avg) + fc(mx))[:, :, None, None]
    x1 = x * ca
    avg_s = jnp.mean(x1, axis=1, keepdims=True)
    max_s = jnp.max(x1, axis=1, keepdims=True)
    sp = jnp.concatenate([avg_s, max_s], axis=1)   # (N, 2, H, W)
    spp = jnp.pad(sp, ((0, 0), (0, 0), (PAD, PAD), (PAD, PAD)))
    acc = jnp.zeros((N, 1, H, W), jnp.float32)
    for dh in range(KSIZE):
        for dw in range(KSIZE):
            patch = spp[:, :, dh:dh + H, dw:dw + W]                 # (N, 2, H, W)
            taps = wconv[None, :, dh, dw, None, None]               # (1, 2, 1, 1)
            acc = acc + jnp.sum(patch * taps, axis=1, keepdims=True)
    sa = jax.nn.sigmoid(acc)
    return x1 * sa


if __name__ == "__main__":
    N, C, H, W = 2, 4, 16, 16
    reduce_ratio = 16
    S = _make_divisible(C // reduce_ratio, 8)      # squeeze channels -> 8

    key = jax.random.PRNGKey(0)
    kx, k1, k2, k3 = jax.random.split(key, 4)
    x = jax.random.normal(kx, (N, C, H, W), dtype=jnp.float32)
    w1 = jax.random.normal(k1, (S, C), dtype=jnp.float32) * 0.2      # fc[0] 1x1 conv, no bias
    w2 = jax.random.normal(k2, (C, S), dtype=jnp.float32) * 0.2      # fc[2] 1x1 conv, no bias
    wconv = jax.random.normal(k3, (2, KSIZE, KSIZE), dtype=jnp.float32) * 0.1  # 7x7 conv, no bias

    out = jax.block_until_ready(cbam_pallas(x, w1, w2, wconv))
    ref = jax.block_until_ready(cbam_reference(x, w1, w2, wconv))

    # Tolerance accounts for possible reduced-precision MXU passes in the tiny
    # in-kernel f32 matmuls; structural/indexing bugs would be O(1e-1) errors.
    np.testing.assert_allclose(np.asarray(out), np.asarray(ref), rtol=5e-3, atol=5e-3)
    print("KERNEL_OK")
</pallas_src>

<mosaic_0001>
module attributes {stable_mosaic.version = 11 : i64} {
  func.func @_cbam_kernel(%arg0: i32, %arg1: memref<1x4x256xf32, #tpu.memory_space<vmem>>, %arg2: memref<8x4xf32, #tpu.memory_space<vmem>>, %arg3: memref<4x8xf32, #tpu.memory_space<vmem>>, %arg4: memref<7x256xf32, #tpu.memory_space<vmem>>, %arg5: memref<98xf32, #tpu.memory_space<smem>>, %arg6: memref<1x4x256xf32, #tpu.memory_space<vmem>>, %arg7: memref<2x1x384xf32, #tpu.memory_space<vmem>>) attributes {dimension_semantics = [#tpu.dimension_semantics<parallel>], iteration_bounds = array<i64: 2>, scalar_prefetch = 0 : i64, scratch_operands = 1 : i64, tpu.core_type = #tpu.core_type<tc>, window_params = [{transform_indices = @transform_0, window_bounds = array<i64: 1, 4, 256>}, {pipeline_mode = #tpu.pipeline_mode<synchronous>, transform_indices = @transform_1, window_bounds = array<i64: 8, 4>}, {pipeline_mode = #tpu.pipeline_mode<synchronous>, transform_indices = @transform_2, window_bounds = array<i64: 4, 8>}, {pipeline_mode = #tpu.pipeline_mode<synchronous>, transform_indices = @transform_3, window_bounds = array<i64: 7, 256>}, {transform_indices = @transform_4, window_bounds = array<i64: 98>}, {transform_indices = @transform_5, window_bounds = array<i64: 1, 4, 256>}]} {
    %c0 = arith.constant 0 : index
    %c0_0 = arith.constant 0 : index
    %c0_1 = arith.constant 0 : index
    %0 = vector.load %arg1[%c0, %c0_0, %c0_1] : memref<1x4x256xf32, #tpu.memory_space<vmem>>, vector<1x4x256xf32>
    %1 = vector.shape_cast %0 : vector<1x4x256xf32> to vector<4x256xf32>
    %cst = arith.constant dense<0.000000e+00> : vector<4xf32>
    %2 = vector.multi_reduction <add>, %1, %cst [1] : vector<4x256xf32> to vector<4xf32>
    %3 = vector.shape_cast %2 : vector<4xf32> to vector<4x1xf32>
    %cst_2 = arith.constant 2.560000e+02 : f32
    %4 = vector.broadcast %cst_2 : f32 to vector<4x1xf32>
    %5 = arith.divf %3, %4 : vector<4x1xf32>
    %cst_3 = arith.constant dense<0xFF800000> : vector<4xf32>
    %6 = vector.multi_reduction <maximumf>, %1, %cst_3 [1] : vector<4x256xf32> to vector<4xf32>
    %7 = vector.shape_cast %6 : vector<4xf32> to vector<4x1xf32>
    %8 = tpu.concatenate %5, %7 in 1 : vector<4x1xf32>, vector<4x1xf32> -> vector<4x2xf32>
    %c0_4 = arith.constant 0 : index
    %c0_5 = arith.constant 0 : index
    %9 = vector.load %arg2[%c0_4, %c0_5] : memref<8x4xf32, #tpu.memory_space<vmem>>, vector<8x4xf32>
    %cst_6 = arith.constant dense<0.000000e+00> : vector<8x2xf32>
    %10 = tpu.matmul %9, %8, %cst_6 {dimension_numbers = #tpu.dot_dimension_numbers<[1], [0], [0], [1], [0, 0, 1, 1], [], []>} : vector<8x4xf32>, vector<4x2xf32>, vector<8x2xf32> -> vector<8x2xf32>
    %cst_7 = arith.constant 0.000000e+00 : f32
    %11 = vector.broadcast %cst_7 : f32 to vector<8x2xf32>
    %12 = arith.maximumf %10, %11 : vector<8x2xf32>
    %c0_8 = arith.constant 0 : index
    %c0_9 = arith.constant 0 : index
    %13 = vector.load %arg3[%c0_8, %c0_9] : memref<4x8xf32, #tpu.memory_space<vmem>>, vector<4x8xf32>
    %cst_10 = arith.constant dense<0.000000e+00> : vector<4x2xf32>
    %14 = tpu.matmul %13, %12, %cst_10 {dimension_numbers = #tpu.dot_dimension_numbers<[1], [0], [0], [1], [0, 0, 1, 1], [], []>} : vector<4x8xf32>, vector<8x2xf32>, vector<4x2xf32> -> vector<4x2xf32>
    %15 = vector.extract_strided_slice %14 {offsets = [0, 0], sizes = [4, 1], strides = [1, 1]} : vector<4x2xf32> to vector<4x1xf32>
    %16 = vector.extract_strided_slice %14 {offsets = [0, 1], sizes = [4, 1], strides = [1, 1]} : vector<4x2xf32> to vector<4x1xf32>
    %17 = arith.addf %15, %16 : vector<4x1xf32>
    %18 = arith.negf %17 : vector<4x1xf32>
    %19 = math.exp %18 : vector<4x1xf32>
    %cst_11 = arith.constant 1.000000e+00 : f32
    %20 = vector.broadcast %cst_11 : f32 to vector<4x1xf32>
    %21 = arith.addf %20, %19 : vector<4x1xf32>
    %22 = arith.divf %20, %21 : vector<4x1xf32>
    %23 = vector.broadcast %22 : vector<4x1xf32> to vector<4x256xf32>
    %24 = arith.mulf %1, %23 : vector<4x256xf32>
    %cst_12 = arith.constant dense<0.000000e+00> : vector<256xf32>
    %25 = vector.multi_reduction <add>, %24, %cst_12 [0] : vector<4x256xf32> to vector<256xf32>
    %26 = vector.shape_cast %25 : vector<256xf32> to vector<1x256xf32>
    %cst_13 = arith.constant 4.000000e+00 : f32
    %27 = vector.broadcast %cst_13 : f32 to vector<1x256xf32>
    %28 = arith.divf %26, %27 : vector<1x256xf32>
    %cst_14 = arith.constant dense<0xFF800000> : vector<256xf32>
    %29 = vector.multi_reduction <maximumf>, %24, %cst_14 [0] : vector<4x256xf32> to vector<256xf32>
    %30 = vector.shape_cast %29 : vector<256xf32> to vector<1x256xf32>
    %cst_15 = arith.constant 0.000000e+00 : f32
    %31 = vector.broadcast %cst_15 : f32 to vector<2x1x384xf32>
    %c0_16 = arith.constant 0 : index
    %c0_17 = arith.constant 0 : index
    %c0_18 = arith.constant 0 : index
    %32 = vector.load %arg7[%c0_16, %c0_17, %c0_18] : memref<2x1x384xf32, #tpu.memory_space<vmem>>, vector<2x1x384xf32>
    tpu.vector_store %arg7[%c0_16, %c0_17, %c0_18], %31 {strides = array<i32>} : memref<2x1x384xf32, #tpu.memory_space<vmem>>, vector<2x1x384xf32>,
    %c0_19 = arith.constant 0 : index
    %c0_20 = arith.constant 0 : index
    %c51 = arith.constant 51 : index
    %33 = vector.load %arg7[%c0_19, %c0_20, %c51] : memref<2x1x384xf32, #tpu.memory_space<vmem>>, vector<1x1x256xf32>
    %34 = vector.shape_cast %33 : vector<1x1x256xf32> to vector<1x256xf32>
    %35 = vector.shape_cast %28 : vector<1x256xf32> to vector<1x1x256xf32>
    tpu.vector_store %arg7[%c0_19, %c0_20, %c51], %35 {strides = array<i32>} : memref<2x1x384xf32, #tpu.memory_space<vmem>>, vector<1x1x256xf32>,
    %c1 = arith.constant 1 : index
    %c0_21 = arith.constant 0 : index
    %c51_22 = arith.constant 51 : index
    %36 = vector.load %arg7[%c1, %c0_21, %c51_22] : memref<2x1x384xf32, #tpu.memory_space<vmem>>, vector<1x1x256xf32>
    %37 = vector.shape_cast %36 : vector<1x1x256xf32> to vector<1x256xf32>
    %38 = vector.shape_cast %30 : vector<1x256xf32> to vector<1x1x256xf32>
    tpu.vector_store %arg7[%c1, %c0_21, %c51_22], %38 {strides = array<i32>} : memref<2x1x384xf32, #tpu.memory_space<vmem>>, vector<1x1x256xf32>,
    %cst_23 = arith.constant 0.000000e+00 : f32
    %39 = vector.broadcast %cst_23 : f32 to vector<1x256xf32>
    %cst_24 = arith.constant 0.000000e+00 : f32
    %40 = vector.broadcast %cst_24 : f32 to vector<1x256xf32>
    %cst_25 = arith.constant 0.000000e+00 : f32
    %41 = vector.broadcast %cst_25 : f32 to vector<1x256xf32>
    %cst_26 = arith.constant 0.000000e+00 : f32
    %42 = vector.broadcast %cst_26 : f32 to vector<1x256xf32>
    %c0_27 = arith.constant 0 : index
    %c0_28 = arith.constant 0 : index
    %43 = vector.load %arg4[%c0_27, %c0_28] : memref<7x256xf32, #tpu.memory_space<vmem>>, vector<1x256xf32>
    %c0_29 = arith.constant 0 : index
    %c0_30 = arith.constant 0 : index
    %c0_31 = arith.constant 0 : index
    %44 = vector.load %arg7[%c0_29, %c0_30, %c0_31] : memref<2x1x384xf32, #tpu.memory_space<vmem>>, vector<1x1x256xf32>
    %45 = vector.shape_cast %44 : vector<1x1x256xf32> to vector<1x256xf32>
    %c1_32 = arith.constant 1 : index
    %c0_33 = arith.constant 0 : index
    %c0_34 = arith.constant 0 : index
    %46 = vector.load %arg7[%c1_32, %c0_33, %c0_34] : memref<2x1x384xf32, #tpu.memory_space<vmem>>, vector<1x1x256xf32>
    %47 = vector.shape_cast %46 : vector<1x1x256xf32> to vector<1x256xf32>
    %c0_35 = arith.constant 0 : index
    %48 = memref.load %arg5[%c0_35] : memref<98xf32, #tpu.memory_space<smem>>
    %c49 = arith.constant 49 : index
    %49 = memref.load %arg5[%c49] : memref<98xf32, #tpu.memory_space<smem>>
    %50 = vector.broadcast %48 : f32 to vector<1x256xf32>
    %51 = arith.mulf %50, %45 : vector<1x256xf32>
    %52 = vector.broadcast %49 : f32 to vector<1x256xf32>
    %53 = arith.mulf %52, %47 : vector<1x256xf32>
    %54 = arith.addf %51, %53 : vector<1x256xf32>
    %55 = arith.mulf %43, %54 : vector<1x256xf32>
    %56 = arith.addf %39, %55 : vector<1x256xf32>
    %c0_36 = arith.constant 0 : index
    %c0_37 = arith.constant 0 : index
    %c16 = arith.constant 16 : index
    %57 = vector.load %arg7[%c0_36, %c0_37, %c16] : memref<2x1x384xf32, #tpu.memory_space<vmem>>, vector<1x1x256xf32>
    %58 = vector.shape_cast %57 : vector<1x1x256xf32> to vector<1x256xf32>
    %c1_38 = arith.constant 1 : index
    %c0_39 = arith.constant 0 : index
    %c16_40 = arith.constant 16 : index
    %59 = vector.load %arg7[%c1_38, %c0_39, %c16_40] : memref<2x1x384xf32, #tpu.memory_space<vmem>>, vector<1x1x256xf32>
    %60 = vector.shape_cast %59 : vector<1x1x256xf32> to vector<1x256xf32>
    %c7 = arith.constant 7 : index
    %61 = memref.load %arg5[%c7] : memref<98xf32, #tpu.memory_space<smem>>
    %c56 = arith.constant 56 : index
    %62 = memref.load %arg5[%c56] : memref<98xf32, #tpu.memory_space<smem>>
    %63 = vector.broadcast %61 : f32 to vector<1x256xf32>
    %64 = arith.mulf %63, %58 : vector<1x256xf32>
    %65 = vector.broadcast %62 : f32 to vector<1x256xf32>
    %66 = arith.mulf %65, %60 : vector<1x256xf32>
    %67 = arith.addf %64, %66 : vector<1x256xf32>
    %68 = arith.mulf %43, %67 : vector<1x256xf32>
    %69 = arith.addf %41, %68 : vector<1x256xf32>
    %c0_41 = arith.constant 0 : index
    %c0_42 = arith.constant 0 : index
    %c32 = arith.constant 32 : index
    %70 = vector.load %arg7[%c0_41, %c0_42, %c32] : memref<2x1x384xf32, #tpu.memory_space<vmem>>, vector<1x1x256xf32>
    %71 = vector.shape_cast %70 : vector<1x1x256xf32> to vector<1x256xf32>
    %c1_43 = arith.constant 1 : index
    %c0_44 = arith.constant 0 : index
    %c32_45 = arith.constant 32 : index
    %72 = vector.load %arg7[%c1_43, %c0_44, %c32_45] : memref<2x1x384xf32, #tpu.memory_space<vmem>>, vector<1x1x256xf32>
    %73 = vector.shape_cast %72 : vector<1x1x256xf32> to vector<1x256xf32>
    %c14 = arith.constant 14 : index
    %74 = memref.load %arg5[%c14] : memref<98xf32, #tpu.memory_space<smem>>
    %c63 = arith.constant 63 : index
    %75 = memref.load %arg5[%c63] : memref<98xf32, #tpu.memory_space<smem>>
    %76 = vector.broadcast %74 : f32 to vector<1x256xf32>
    %77 = arith.mulf %76, %71 : vector<1x256xf32>
    %78 = vector.broadcast %75 : f32 to vector<1x256xf32>
    %79 = arith.mulf %78, %73 : vector<1x256xf32>
    %80 = arith.addf %77, %79 : vector<1x256xf32>
    %81 = arith.mulf %43, %80 : vector<1x256xf32>
    %82 = arith.addf %56, %81 : vector<1x256xf32>
    %c0_46 = arith.constant 0 : index
    %c0_47 = arith.constant 0 : index
    %c48 = arith.constant 48 : index
    %83 = vector.load %arg7[%c0_46, %c0_47, %c48] : memref<2x1x384xf32, #tpu.memory_space<vmem>>, vector<1x1x256xf32>
    %84 = vector.shape_cast %83 : vector<1x1x256xf32> to vector<1x256xf32>
    %c1_48 = arith.constant 1 : index
    %c0_49 = arith.constant 0 : index
    %c48_50 = arith.constant 48 : index
    %85 = vector.load %arg7[%c1_48, %c0_49, %c48_50] : memref<2x1x384xf32, #tpu.memory_space<vmem>>, vector<1x1x256xf32>
    %86 = vector.shape_cast %85 : vector<1x1x256xf32> to vector<1x256xf32>
    %c21 = arith.constant 21 : index
    %87 = memref.load %arg5[%c21] : memref<98xf32, #tpu.memory_space<smem>>
    %c70 = arith.constant 70 : index
    %88 = memref.load %arg5[%c70] : memref<98xf32, #tpu.memory_space<smem>>
    %89 = vector.broadcast %87 : f32 to vector<1x256xf32>
    %90 = arith.mulf %89, %84 : vector<1x256xf32>
    %91 = vector.broadcast %88 : f32 to vector<1x256xf32>
    %92 = arith.mulf %91, %86 : vector<1x256xf32>
    %93 = arith.addf %90, %92 : vector<1x256xf32>
    %94 = arith.mulf %43, %93 : vector<1x256xf32>
    %95 = arith.addf %69, %94 : vector<1x256xf32>
    %c0_51 = arith.constant 0 : index
    %c0_52 = arith.constant 0 : index
    %c64 = arith.constant 64 : index
    %96 = vector.load %arg7[%c0_51, %c0_52, %c64] : memref<2x1x384xf32, #tpu.memory_space<vmem>>, vector<1x1x256xf32>
    %97 = vector.shape_cast %96 : vector<1x1x256xf32> to vector<1x256xf32>
    %c1_53 = arith.constant 1 : index
    %c0_54 = arith.constant 0 : index
    %c64_55 = arith.constant 64 : index
    %98 = vector.load %arg7[%c1_53, %c0_54, %c64_55] : memref<2x1x384xf32, #tpu.memory_space<vmem>>, vector<1x1x256xf32>
    %99 = vector.shape_cast %98 : vector<1x1x256xf32> to vector<1x256xf32>
    %c28 = arith.constant 28 : index
    %100 = memref.load %arg5[%c28] : memref<98xf32, #tpu.memory_space<smem>>
    %c77 = arith.constant 77 : index
    %101 = memref.load %arg5[%c77] : memref<98xf32, #tpu.memory_space<smem>>
    %102 = vector.broadcast %100 : f32 to vector<1x256xf32>
    %103 = arith.mulf %102, %97 : vector<1x256xf32>
    %104 = vector.broadcast %101 : f32 to vector<1x256xf32>
    %105 = arith.mulf %104, %99 : vector<1x256xf32>
    %106 = arith.addf %103, %105 : vector<1x256xf32>
    %107 = arith.mulf %43, %106 : vector<1x256xf32>
    %108 = arith.addf %82, %107 : vector<1x256xf32>
    %c0_56 = arith.constant 0 : index
    %c0_57 = arith.constant 0 : index
    %c80 = arith.constant 80 : index
    %109 = vector.load %arg7[%c0_56, %c0_57, %c80] : memref<2x1x384xf32, #tpu.memory_space<vmem>>, vector<1x1x256xf32>
    %110 = vector.shape_cast %109 : vector<1x1x256xf32> to vector<1x256xf32>
    %c1_58 = arith.constant 1 : index
    %c0_59 = arith.constant 0 : index
    %c80_60 = arith.constant 80 : index
    %111 = vector.load %arg7[%c1_58, %c0_59, %c80_60] : memref<2x1x384xf32, #tpu.memory_space<vmem>>, vector<1x1x256xf32>
    %112 = vector.shape_cast %111 : vector<1x1x256xf32> to vector<1x256xf32>
    %c35 = arith.constant 35 : index
    %113 = memref.load %arg5[%c35] : memref<98xf32, #tpu.memory_space<smem>>
    %c84 = arith.constant 84 : index
    %114 = memref.load %arg5[%c84] : memref<98xf32, #tpu.memory_space<smem>>
    %115 = vector.broadcast %113 : f32 to vector<1x256xf32>
    %116 = arith.mulf %115, %110 : vector<1x256xf32>
    %117 = vector.broadcast %114 : f32 to vector<1x256xf32>
    %118 = arith.mulf %117, %112 : vector<1x256xf32>
    %119 = arith.addf %116, %118 : vector<1x256xf32>
    %120 = arith.mulf %43, %119 : vector<1x256xf32>
    %121 = arith.addf %95, %120 : vector<1x256xf32>
    %c0_61 = arith.constant 0 : index
    %c0_62 = arith.constant 0 : index
    %c96 = arith.constant 96 : index
    %122 = vector.load %arg7[%c0_61, %c0_62, %c96] : memref<2x1x384xf32, #tpu.memory_space<vmem>>, vector<1x1x256xf32>
    %123 = vector.shape_cast %122 : vector<1x1x256xf32> to vector<1x256xf32>
    %c1_63 = arith.constant 1 : index
    %c0_64 = arith.constant 0 : index
    %c96_65 = arith.constant 96 : index
    %124 = vector.load %arg7[%c1_63, %c0_64, %c96_65] : memref<2x1x384xf32, #tpu.memory_space<vmem>>, vector<1x1x256xf32>
    %125 = vector.shape_cast %124 : vector<1x1x256xf32> to vector<1x256xf32>
    %c42 = arith.constant 42 : index
    %126 = memref.load %arg5[%c42] : memref<98xf32, #tpu.memory_space<smem>>
    %c91 = arith.constant 91 : index
    %127 = memref.load %arg5[%c91] : memref<98xf32, #tpu.memory_space<smem>>
    %128 = vector.broadcast %126 : f32 to vector<1x256xf32>
    %129 = arith.mulf %128, %123 : vector<1x256xf32>
    %130 = vector.broadcast %127 : f32 to vector<1x256xf32>
    %131 = arith.mulf %130, %125 : vector<1x256xf32>
    %132 = arith.addf %129, %131 : vector<1x256xf32>
    %133 = arith.mulf %43, %132 : vector<1x256xf32>
    %134 = arith.addf %108, %133 : vector<1x256xf32>
    %c1_66 = arith.constant 1 : index
    %c0_67 = arith.constant 0 : index
    %135 = vector.load %arg4[%c1_66, %c0_67] : memref<7x256xf32, #tpu.memory_space<vmem>>, vector<1x256xf32>
    %c0_68 = arith.constant 0 : index
    %c0_69 = arith.constant 0 : index
    %c1_70 = arith.constant 1 : index
    %136 = vector.load %arg7[%c0_68, %c0_69, %c1_70] : memref<2x1x384xf32, #tpu.memory_space<vmem>>, vector<1x1x256xf32>
    %137 = vector.shape_cast %136 : vector<1x1x256xf32> to vector<1x256xf32>
    %c1_71 = arith.constant 1 : index
    %c0_72 = arith.constant 0 : index
    %c1_73 = arith.constant 1 : index
    %138 = vector.load %arg7[%c1_71, %c0_72, %c1_73] : memref<2x1x384xf32, #tpu.memory_space<vmem>>, vector<1x1x256xf32>
    %139 = vector.shape_cast %138 : vector<1x1x256xf32> to vector<1x256xf32>
    %c1_74 = arith.constant 1 : index
    %140 = memref.load %arg5[%c1_74] : memref<98xf32, #tpu.memory_space<smem>>
    %c50 = arith.constant 50 : index
    %141 = memref.load %arg5[%c50] : memref<98xf32, #tpu.memory_space<smem>>
    %142 = vector.broadcast %140 : f32 to vector<1x256xf32>
    %143 = arith.mulf %142, %137 : vector<1x256xf32>
    %144 = vector.broadcast %141 : f32 to vector<1x256xf32>
    %145 = arith.mulf %144, %139 : vector<1x256xf32>
    %146 = arith.addf %143, %145 : vector<1x256xf32>
    %147 = arith.mulf %135, %146 : vector<1x256xf32>
    %148 = arith.addf %40, %147 : vector<1x256xf32>
    %c0_75 = arith.constant 0 : index
    %c0_76 = arith.constant 0 : index
    %c17 = arith.constant 17 : index
    %149 = vector.load %arg7[%c0_75, %c0_76, %c17] : memref<2x1x384xf32, #tpu.memory_space<vmem>>, vector<1x1x256xf32>
    %150 = vector.shape_cast %149 : vector<1x1x256xf32> to vector<1x256xf32>
    %c1_77 = arith.constant 1 : index
    %c0_78 = arith.constant 0 : index
    %c17_79 = arith.constant 17 : index
    %151 = vector.load %arg7[%c1_77, %c0_78, %c17_79] : memref<2x1x384xf32, #tpu.memory_space<vmem>>, vector<1x1x256xf32>
    %152 = vector.shape_cast %151 : vector<1x1x256xf32> to vector<1x256xf32>
    %c8 = arith.constant 8 : index
    %153 = memref.load %arg5[%c8] : memref<98xf32, #tpu.memory_space<smem>>
    %c57 = arith.constant 57 : index
    %154 = memref.load %arg5[%c57] : memref<98xf32, #tpu.memory_space<smem>>
    %155 = vector.broadcast %153 : f32 to vector<1x256xf32>
    %156 = arith.mulf %155, %150 : vector<1x256xf32>
    %157 = vector.broadcast %154 : f32 to vector<1x256xf32>
    %158 = arith.mulf %157, %152 : vector<1x256xf32>
    %159 = arith.addf %156, %158 : vector<1x256xf32>
    %160 = arith.mulf %135, %159 : vector<1x256xf32>
    %161 = arith.addf %42, %160 : vector<1x256xf32>
    %c0_80 = arith.constant 0 : index
    %c0_81 = arith.constant 0 : index
    %c33 = arith.constant 33 : index
    %162 = vector.load %arg7[%c0_80, %c0_81, %c33] : memref<2x1x384xf32, #tpu.memory_space<vmem>>, vector<1x1x256xf32>
    %163 = vector.shape_cast %162 : vector<1x1x256xf32> to vector<1x256xf32>
    %c1_82 = arith.constant 1 : index
    %c0_83 = arith.constant 0 : index
    %c33_84 = arith.constant 33 : index
    %164 = vector.load %arg7[%c1_82, %c0_83, %c33_84] : memref<2x1x384xf32, #tpu.memory_space<vmem>>, vector<1x1x256xf32>
    %165 = vector.shape_cast %164 : vector<1x1x256xf32> to vector<1x256xf32>
    %c15 = arith.constant 15 : index
    %166 = memref.load %arg5[%c15] : memref<98xf32, #tpu.memory_space<smem>>
    %c64_85 = arith.constant 64 : index
    %167 = memref.load %arg5[%c64_85] : memref<98xf32, #tpu.memory_space<smem>>
    %168 = vector.broadcast %166 : f32 to vector<1x256xf32>
    %169 = arith.mulf %168, %163 : vector<1x256xf32>
    %170 = vector.broadcast %167 : f32 to vector<1x256xf32>
    %171 = arith.mulf %170, %165 : vector<1x256xf32>
    %172 = arith.addf %169, %171 : vector<1x256xf32>
    %173 = arith.mulf %135, %172 : vector<1x256xf32>
    %174 = arith.addf %148, %173 : vector<1x256xf32>
    %c0_86 = arith.constant 0 : index
    %c0_87 = arith.constant 0 : index
    %c49_88 = arith.constant 49 : index
    %175 = vector.load %arg7[%c0_86, %c0_87, %c49_88] : memref<2x1x384xf32, #tpu.memory_space<vmem>>, vector<1x1x256xf32>
    %176 = vector.shape_cast %175 : vector<1x1x256xf32> to vector<1x256xf32>
    %c1_89 = arith.constant 1 : index
    %c0_90 = arith.constant 0 : index
    %c49_91 = arith.constant 49 : index
    %177 = vector.load %arg7[%c1_89, %c0_90, %c49_91] : memref<2x1x384xf32, #tpu.memory_space<vmem>>, vector<1x1x256xf32>
    %178 = vector.shape_cast %177 : vector<1x1x256xf32> to vector<1x256xf32>
    %c22 = arith.constant 22 : index
    %179 = memref.load %arg5[%c22] : memref<98xf32, #tpu.memory_space<smem>>
    %c71 = arith.constant 71 : index
    %180 = memref.load %arg5[%c71] : memref<98xf32, #tpu.memory_space<smem>>
    %181 = vector.broadcast %179 : f32 to vector<1x256xf32>
    %182 = arith.mulf %181, %176 : vector<1x256xf32>
    %183 = vector.broadcast %180 : f32 to vector<1x256xf32>
    %184 = arith.mulf %183, %178 : vector<1x256xf32>
    %185 = arith.addf %182, %184 : vector<1x256xf32>
    %186 = arith.mulf %135, %185 : vector<1x256xf32>
    %187 = arith.addf %161, %186 : vector<1x256xf32>
    %c0_92 = arith.constant 0 : index
    %c0_93 = arith.constant 0 : index
    %c65 = arith.constant 65 : index
    %188 = vector.load %arg7[%c0_92, %c0_93, %c65] : memref<2x1x384xf32, #tpu.memory_space<vmem>>, vector<1x1x256xf32>
    %189 = vector.shape_cast %188 : vector<1x1x256xf32> to vector<1x256xf32>
    %c1_94 = arith.constant 1 : index
    %c0_95 = arith.constant 0 : index
    %c65_96 = arith.constant 65 : index
    %190 = vector.load %arg7[%c1_94, %c0_95, %c65_96] : memref<2x1x384xf32, #tpu.memory_space<vmem>>, vector<1x1x256xf32>
    %191 = vector.shape_cast %190 : vector<1x1x256xf32> to vector<1x256xf32>
    %c29 = arith.constant 29 : index
    %192 = memref.load %arg5[%c29] : memref<98xf32, #tpu.memory_space<smem>>
    %c78 = arith.constant 78 : index
    %193 = memref.load %arg5[%c78] : memref<98xf32, #tpu.memory_space<smem>>
    %194 = vector.broadcast %192 : f32 to vector<1x256xf32>
    %195 = arith.mulf %194, %189 : vector<1x256xf32>
    %196 = vector.broadcast %193 : f32 to vector<1x256xf32>
    %197 = arith.mulf %196, %191 : vector<1x256xf32>
    %198 = arith.addf %195, %197 : vector<1x256xf32>
    %199 = arith.mulf %135, %198 : vector<1x256xf32>
    %200 = arith.addf %174, %199 : vector<1x256xf32>
    %c0_97 = arith.constant 0 : index
    %c0_98 = arith.constant 0 : index
    %c81 = arith.constant 81 : index
    %201 = vector.load %arg7[%c0_97, %c0_98, %c81] : memref<2x1x384xf32, #tpu.memory_space<vmem>>, vector<1x1x256xf32>
    %202 = vector.shape_cast %201 : vector<1x1x256xf32> to vector<1x256xf32>
    %c1_99 = arith.constant 1 : index
    %c0_100 = arith.constant 0 : index
    %c81_101 = arith.constant 81 : index
    %203 = vector.load %arg7[%c1_99, %c0_100, %c81_101] : memref<2x1x384xf32, #tpu.memory_space<vmem>>, vector<1x1x256xf32>
    %204 = vector.shape_cast %203 : vector<1x1x256xf32> to vector<1x256xf32>
    %c36 = arith.constant 36 : index
    %205 = memref.load %arg5[%c36] : memref<98xf32, #tpu.memory_space<smem>>
    %c85 = arith.constant 85 : index
    %206 = memref.load %arg5[%c85] : memref<98xf32, #tpu.memory_space<smem>>
    %207 = vector.broadcast %205 : f32 to vector<1x256xf32>
    %208 = arith.mulf %207, %202 : vector<1x256xf32>
    %209 = vector.broadcast %206 : f32 to vector<1x256xf32>
    %210 = arith.mulf %209, %204 : vector<1x256xf32>
    %211 = arith.addf %208, %210 : vector<1x256xf32>
    %212 = arith.mulf %135, %211 : vector<1x256xf32>
    %213 = arith.addf %187, %212 : vector<1x256xf32>
    %c0_102 = arith.constant 0 : index
    %c0_103 = arith.constant 0 : index
    %c97 = arith.constant 97 : index
    %214 = vector.load %arg7[%c0_102, %c0_103, %c97] : memref<2x1x384xf32, #tpu.memory_space<vmem>>, vector<1x1x256xf32>
    %215 = vector.shape_cast %214 : vector<1x1x256xf32> to vector<1x256xf32>
    %c1_104 = arith.constant 1 : index
    %c0_105 = arith.constant 0 : index
    %c97_106 = arith.constant 97 : index
    %216 = vector.load %arg7[%c1_104, %c0_105, %c97_106] : memref<2x1x384xf32, #tpu.memory_space<vmem>>, vector<1x1x256xf32>
    %217 = vector.shape_cast %216 : vector<1x1x256xf32> to vector<1x256xf32>
    %c43 = arith.constant 43 : index
    %218 = memref.load %arg5[%c43] : memref<98xf32, #tpu.memory_space<smem>>
    %c92 = arith.constant 92 : index
    %219 = memref.load %arg5[%c92] : memref<98xf32, #tpu.memory_space<smem>>
    %220 = vector.broadcast %218 : f32 to vector<1x256xf32>
    %221 = arith.mulf %220, %215 : vector<1x256xf32>
    %222 = vector.broadcast %219 : f32 to vector<1x256xf32>
    %223 = arith.mulf %222, %217 : vector<1x256xf32>
    %224 = arith.addf %221, %223 : vector<1x256xf32>
    %225 = arith.mulf %135, %224 : vector<1x256xf32>
    %226 = arith.addf %200, %225 : vector<1x256xf32>
    %c2 = arith.constant 2 : index
    %c0_107 = arith.constant 0 : index
    %227 = vector.load %arg4[%c2, %c0_107] : memref<7x256xf32, #tpu.memory_space<vmem>>, vector<1x256xf32>
    %c0_108 = arith.constant 0 : index
    %c0_109 = arith.constant 0 : index
    %c2_110 = arith.constant 2 : index
    %228 = vector.load %arg7[%c0_108, %c0_109, %c2_110] : memref<2x1x384xf32, #tpu.memory_space<vmem>>, vector<1x1x256xf32>
    %229 = vector.shape_cast %228 : vector<1x1x256xf32> to vector<1x256xf32>
    %c1_111 = arith.constant 1 : index
    %c0_112 = arith.constant 0 : index
    %c2_113 = arith.constant 2 : index
    %230 = vector.load %arg7[%c1_111, %c0_112, %c2_113] : memref<2x1x384xf32, #tpu.memory_space<vmem>>, vector<1x1x256xf32>
    %231 = vector.shape_cast %230 : vector<1x1x256xf32> to vector<1x256xf32>
    %c2_114 = arith.constant 2 : index
    %232 = memref.load %arg5[%c2_114] : memref<98xf32, #tpu.memory_space<smem>>
    %c51_115 = arith.constant 51 : index
    %233 = memref.load %arg5[%c51_115] : memref<98xf32, #tpu.memory_space<smem>>
    %234 = vector.broadcast %232 : f32 to vector<1x256xf32>
    %235 = arith.mulf %234, %229 : vector<1x256xf32>
    %236 = vector.broadcast %233 : f32 to vector<1x256xf32>
    %237 = arith.mulf %236, %231 : vector<1x256xf32>
    %238 = arith.addf %235, %237 : vector<1x256xf32>
    %239 = arith.mulf %227, %238 : vector<1x256xf32>
    %240 = arith.addf %134, %239 : vector<1x256xf32>
    %c0_116 = arith.constant 0 : index
    %c0_117 = arith.constant 0 : index
    %c18 = arith.constant 18 : index
    %241 = vector.load %arg7[%c0_116, %c0_117, %c18] : memref<2x1x384xf32, #tpu.memory_space<vmem>>, vector<1x1x256xf32>
    %242 = vector.shape_cast %241 : vector<1x1x256xf32> to vector<1x256xf32>
    %c1_118 = arith.constant 1 : index
    %c0_119 = arith.constant 0 : index
    %c18_120 = arith.constant 18 : index
    %243 = vector.load %arg7[%c1_118, %c0_119, %c18_120] : memref<2x1x384xf32, #tpu.memory_space<vmem>>, vector<1x1x256xf32>
    %244 = vector.shape_cast %243 : vector<1x1x256xf32> to vector<1x256xf32>
    %c9 = arith.constant 9 : index
    %245 = memref.load %arg5[%c9] : memref<98xf32, #tpu.memory_space<smem>>
    %c58 = arith.constant 58 : index
    %246 = memref.load %arg5[%c58] : memref<98xf32, #tpu.memory_space<smem>>
    %247 = vector.broadcast %245 : f32 to vector<1x256xf32>
    %248 = arith.mulf %247, %242 : vector<1x256xf32>
    %249 = vector.broadcast %246 : f32 to vector<1x256xf32>
    %250 = arith.mulf %249, %244 : vector<1x256xf32>
    %251 = arith.addf %248, %250 : vector<1x256xf32>
    %252 = arith.mulf %227, %251 : vector<1x256xf32>
    %253 = arith.addf %121, %252 : vector<1x256xf32>
    %c0_121 = arith.constant 0 : index
    %c0_122 = arith.constant 0 : index
    %c34 = arith.constant 34 : index
    %254 = vector.load %arg7[%c0_121, %c0_122, %c34] : memref<2x1x384xf32, #tpu.memory_space<vmem>>, vector<1x1x256xf32>
    %255 = vector.shape_cast %254 : vector<1x1x256xf32> to vector<1x256xf32>
    %c1_123 = arith.constant 1 : index
    %c0_124 = arith.constant 0 : index
    %c34_125 = arith.constant 34 : index
    %256 = vector.load %arg7[%c1_123, %c0_124, %c34_125] : memref<2x1x384xf32, #tpu.memory_space<vmem>>, vector<1x1x256xf32>
    %257 = vector.shape_cast %256 : vector<1x1x256xf32> to vector<1x256xf32>
    %c16_126 = arith.constant 16 : index
    %258 = memref.load %arg5[%c16_126] : memref<98xf32, #tpu.memory_space<smem>>
    %c65_127 = arith.constant 65 : index
    %259 = memref.load %arg5[%c65_127] : memref<98xf32, #tpu.memory_space<smem>>
    %260 = vector.broadcast %258 : f32 to vector<1x256xf32>
    %261 = arith.mulf %260, %255 : vector<1x256xf32>
    %262 = vector.broadcast %259 : f32 to vector<1x256xf32>
    %263 = arith.mulf %262, %257 : vector<1x256xf32>
    %264 = arith.addf %261, %263 : vector<1x256xf32>
    %265 = arith.mulf %227, %264 : vector<1x256xf32>
    %266 = arith.addf %240, %265 : vector<1x256xf32>
    %c0_128 = arith.constant 0 : index
    %c0_129 = arith.constant 0 : index
    %c50_130 = arith.constant 50 : index
    %267 = vector.load %arg7[%c0_128, %c0_129, %c50_130] : memref<2x1x384xf32, #tpu.memory_space<vmem>>, vector<1x1x256xf32>
    %268 = vector.shape_cast %267 : vector<1x1x256xf32> to vector<1x256xf32>
    %c1_131 = arith.constant 1 : index
    %c0_132 = arith.constant 0 : index
    %c50_133 = arith.constant 50 : index
    %269 = vector.load %arg7[%c1_131, %c0_132, %c50_133] : memref<2x1x384xf32, #tpu.memory_space<vmem>>, vector<1x1x256xf32>
    %270 = vector.shape_cast %269 : vector<1x1x256xf32> to vector<1x256xf32>
    %c23 = arith.constant 23 : index
    %271 = memref.load %arg5[%c23] : memref<98xf32, #tpu.memory_space<smem>>
    %c72 = arith.constant 72 : index
    %272 = memref.load %arg5[%c72] : memref<98xf32, #tpu.memory_space<smem>>
    %273 = vector.broadcast %271 : f32 to vector<1x256xf32>
    %274 = arith.mulf %273, %268 : vector<1x256xf32>
    %275 = vector.broadcast %272 : f32 to vector<1x256xf32>
    %276 = arith.mulf %275, %270 : vector<1x256xf32>
    %277 = arith.addf %274, %276 : vector<1x256xf32>
    %278 = arith.mulf %227, %277 : vector<1x256xf32>
    %279 = arith.addf %253, %278 : vector<1x256xf32>
    %c0_134 = arith.constant 0 : index
    %c0_135 = arith.constant 0 : index
    %c66 = arith.constant 66 : index
    %280 = vector.load %arg7[%c0_134, %c0_135, %c66] : memref<2x1x384xf32, #tpu.memory_space<vmem>>, vector<1x1x256xf32>
    %281 = vector.shape_cast %280 : vector<1x1x256xf32> to vector<1x256xf32>
    %c1_136 = arith.constant 1 : index
    %c0_137 = arith.constant 0 : index
    %c66_138 = arith.constant 66 : index
    %282 = vector.load %arg7[%c1_136, %c0_137, %c66_138] : memref<2x1x384xf32, #tpu.memory_space<vmem>>, vector<1x1x256xf32>
    %283 = vector.shape_cast %282 : vector<1x1x256xf32> to vector<1x256xf32>
    %c30 = arith.constant 30 : index
    %284 = memref.load %arg5[%c30] : memref<98xf32, #tpu.memory_space<smem>>
    %c79 = arith.constant 79 : index
    %285 = memref.load %arg5[%c79] : memref<98xf32, #tpu.memory_space<smem>>
    %286 = vector.broadcast %284 : f32 to vector<1x256xf32>
    %287 = arith.mulf %286, %281 : vector<1x256xf32>
    %288 = vector.broadcast %285 : f32 to vector<1x256xf32>
    %289 = arith.mulf %288, %283 : vector<1x256xf32>
    %290 = arith.addf %287, %289 : vector<1x256xf32>
    %291 = arith.mulf %227, %290 : vector<1x256xf32>
    %292 = arith.addf %266, %291 : vector<1x256xf32>
    %c0_139 = arith.constant 0 : index
    %c0_140 = arith.constant 0 : index
    %c82 = arith.constant 82 : index
    %293 = vector.load %arg7[%c0_139, %c0_140, %c82] : memref<2x1x384xf32, #tpu.memory_space<vmem>>, vector<1x1x256xf32>
    %294 = vector.shape_cast %293 : vector<1x1x256xf32> to vector<1x256xf32>
    %c1_141 = arith.constant 1 : index
    %c0_142 = arith.constant 0 : index
    %c82_143 = arith.constant 82 : index
    %295 = vector.load %arg7[%c1_141, %c0_142, %c82_143] : memref<2x1x384xf32, #tpu.memory_space<vmem>>, vector<1x1x256xf32>
    %296 = vector.shape_cast %295 : vector<1x1x256xf32> to vector<1x256xf32>
    %c37 = arith.constant 37 : index
    %297 = memref.load %arg5[%c37] : memref<98xf32, #tpu.memory_space<smem>>
    %c86 = arith.constant 86 : index
    %298 = memref.load %arg5[%c86] : memref<98xf32, #tpu.memory_space<smem>>
    %299 = vector.broadcast %297 : f32 to vector<1x256xf32>
    %300 = arith.mulf %299, %294 : vector<1x256xf32>
    %301 = vector.broadcast %298 : f32 to vector<1x256xf32>
    %302 = arith.mulf %301, %296 : vector<1x256xf32>
    %303 = arith.addf %300, %302 : vector<1x256xf32>
    %304 = arith.mulf %227, %303 : vector<1x256xf32>
    %305 = arith.addf %279, %304 : vector<1x256xf32>
    %c0_144 = arith.constant 0 : index
    %c0_145 = arith.constant 0 : index
    %c98 = arith.constant 98 : index
    %306 = vector.load %arg7[%c0_144, %c0_145, %c98] : memref<2x1x384xf32, #tpu.memory_space<vmem>>, vector<1x1x256xf32>
    %307 = vector.shape_cast %306 : vector<1x1x256xf32> to vector<1x256xf32>
    %c1_146 = arith.constant 1 : index
    %c0_147 = arith.constant 0 : index
    %c98_148 = arith.constant 98 : index
    %308 = vector.load %arg7[%c1_146, %c0_147, %c98_148] : memref<2x1x384xf32, #tpu.memory_space<vmem>>, vector<1x1x256xf32>
    %309 = vector.shape_cast %308 : vector<1x1x256xf32> to vector<1x256xf32>
    %c44 = arith.constant 44 : index
    %310 = memref.load %arg5[%c44] : memref<98xf32, #tpu.memory_space<smem>>
    %c93 = arith.constant 93 : index
    %311 = memref.load %arg5[%c93] : memref<98xf32, #tpu.memory_space<smem>>
    %312 = vector.broadcast %310 : f32 to vector<1x256xf32>
    %313 = arith.mulf %312, %307 : vector<1x256xf32>
    %314 = vector.broadcast %311 : f32 to vector<1x256xf32>
    %315 = arith.mulf %314, %309 : vector<1x256xf32>
    %316 = arith.addf %313, %315 : vector<1x256xf32>
    %317 = arith.mulf %227, %316 : vector<1x256xf32>
    %318 = arith.addf %292, %317 : vector<1x256xf32>
    %c3 = arith.constant 3 : index
    %c0_149 = arith.constant 0 : index
    %319 = vector.load %arg4[%c3, %c0_149] : memref<7x256xf32, #tpu.memory_space<vmem>>, vector<1x256xf32>
    %c0_150 = arith.constant 0 : index
    %c0_151 = arith.constant 0 : index
    %c3_152 = arith.constant 3 : index
    %320 = vector.load %arg7[%c0_150, %c0_151, %c3_152] : memref<2x1x384xf32, #tpu.memory_space<vmem>>, vector<1x1x256xf32>
    %321 = vector.shape_cast %320 : vector<1x1x256xf32> to vector<1x256xf32>
    %c1_153 = arith.constant 1 : index
    %c0_154 = arith.constant 0 : index
    %c3_155 = arith.constant 3 : index
    %322 = vector.load %arg7[%c1_153, %c0_154, %c3_155] : memref<2x1x384xf32, #tpu.memory_space<vmem>>, vector<1x1x256xf32>
    %323 = vector.shape_cast %322 : vector<1x1x256xf32> to vector<1x256xf32>
    %c3_156 = arith.constant 3 : index
    %324 = memref.load %arg5[%c3_156] : memref<98xf32, #tpu.memory_space<smem>>
    %c52 = arith.constant 52 : index
    %325 = memref.load %arg5[%c52] : memref<98xf32, #tpu.memory_space<smem>>
    %326 = vector.broadcast %324 : f32 to vector<1x256xf32>
    %327 = arith.mulf %326, %321 : vector<1x256xf32>
    %328 = vector.broadcast %325 : f32 to vector<1x256xf32>
    %329 = arith.mulf %328, %323 : vector<1x256xf32>
    %330 = arith.addf %327, %329 : vector<1x256xf32>
    %331 = arith.mulf %319, %330 : vector<1x256xf32>
    %332 = arith.addf %226, %331 : vector<1x256xf32>
    %c0_157 = arith.constant 0 : index
    %c0_158 = arith.constant 0 : index
    %c19 = arith.constant 19 : index
    %333 = vector.load %arg7[%c0_157, %c0_158, %c19] : memref<2x1x384xf32, #tpu.memory_space<vmem>>, vector<1x1x256xf32>
    %334 = vector.shape_cast %333 : vector<1x1x256xf32> to vector<1x256xf32>
    %c1_159 = arith.constant 1 : index
    %c0_160 = arith.constant 0 : index
    %c19_161 = arith.constant 19 : index
    %335 = vector.load %arg7[%c1_159, %c0_160, %c19_161] : memref<2x1x384xf32, #tpu.memory_space<vmem>>, vector<1x1x256xf32>
    %336 = vector.shape_cast %335 : vector<1x1x256xf32> to vector<1x256xf32>
    %c10 = arith.constant 10 : index
    %337 = memref.load %arg5[%c10] : memref<98xf32, #tpu.memory_space<smem>>
    %c59 = arith.constant 59 : index
    %338 = memref.load %arg5[%c59] : memref<98xf32, #tpu.memory_space<smem>>
    %339 = vector.broadcast %337 : f32 to vector<1x256xf32>
    %340 = arith.mulf %339, %334 : vector<1x256xf32>
    %341 = vector.broadcast %338 : f32 to vector<1x256xf32>
    %342 = arith.mulf %341, %336 : vector<1x256xf32>
    %343 = arith.addf %340, %342 : vector<1x256xf32>
    %344 = arith.mulf %319, %343 : vector<1x256xf32>
    %345 = arith.addf %213, %344 : vector<1x256xf32>
    %c0_162 = arith.constant 0 : index
    %c0_163 = arith.constant 0 : index
    %c35_164 = arith.constant 35 : index
    %346 = vector.load %arg7[%c0_162, %c0_163, %c35_164] : memref<2x1x384xf32, #tpu.memory_space<vmem>>, vector<1x1x256xf32>
    %347 = vector.shape_cast %346 : vector<1x1x256xf32> to vector<1x256xf32>
    %c1_165 = arith.constant 1 : index
    %c0_166 = arith.constant 0 : index
    %c35_167 = arith.constant 35 : index
    %348 = vector.load %arg7[%c1_165, %c0_166, %c35_167] : memref<2x1x384xf32, #tpu.memory_space<vmem>>, vector<1x1x256xf32>
    %349 = vector.shape_cast %348 : vector<1x1x256xf32> to vector<1x256xf32>
    %c17_168 = arith.constant 17 : index
    %350 = memref.load %arg5[%c17_168] : memref<98xf32, #tpu.memory_space<smem>>
    %c66_169 = arith.constant 66 : index
    %351 = memref.load %arg5[%c66_169] : memref<98xf32, #tpu.memory_space<smem>>
    %352 = vector.broadcast %350 : f32 to vector<1x256xf32>
    %353 = arith.mulf %352, %347 : vector<1x256xf32>
    %354 = vector.broadcast %351 : f32 to vector<1x256xf32>
    %355 = arith.mulf %354, %349 : vector<1x256xf32>
    %356 = arith.addf %353, %355 : vector<1x256xf32>
    %357 = arith.mulf %319, %356 : vector<1x256xf32>
    %358 = arith.addf %332, %357 : vector<1x256xf32>
    %c0_170 = arith.constant 0 : index
    %c0_171 = arith.constant 0 : index
    %c51_172 = arith.constant 51 : index
    %359 = vector.load %arg7[%c0_170, %c0_171, %c51_172] : memref<2x1x384xf32, #tpu.memory_space<vmem>>, vector<1x1x256xf32>
    %360 = vector.shape_cast %359 : vector<1x1x256xf32> to vector<1x256xf32>
    %c1_173 = arith.constant 1 : index
    %c0_174 = arith.constant 0 : index
    %c51_175 = arith.constant 51 : index
    %361 = vector.load %arg7[%c1_173, %c0_174, %c51_175] : memref<2x1x384xf32, #tpu.memory_space<vmem>>, vector<1x1x256xf32>
    %362 = vector.shape_cast %361 : vector<1x1x256xf32> to vector<1x256xf32>
    %c24 = arith.constant 24 : index
    %363 = memref.load %arg5[%c24] : memref<98xf32, #tpu.memory_space<smem>>
    %c73 = arith.constant 73 : index
    %364 = memref.load %arg5[%c73] : memref<98xf32, #tpu.memory_space<smem>>
    %365 = vector.broadcast %363 : f32 to vector<1x256xf32>
    %366 = arith.mulf %365, %360 : vector<1x256xf32>
    %367 = vector.broadcast %364 : f32 to vector<1x256xf32>
    %368 = arith.mulf %367, %362 : vector<1x256xf32>
    %369 = arith.addf %366, %368 : vector<1x256xf32>
    %370 = arith.mulf %319, %369 : vector<1x256xf32>
    %371 = arith.addf %345, %370 : vector<1x256xf32>
    %c0_176 = arith.constant 0 : index
    %c0_177 = arith.constant 0 : index
    %c67 = arith.constant 67 : index
    %372 = vector.load %arg7[%c0_176, %c0_177, %c67] : memref<2x1x384xf32, #tpu.memory_space<vmem>>, vector<1x1x256xf32>
    %373 = vector.shape_cast %372 : vector<1x1x256xf32> to vector<1x256xf32>
    %c1_178 = arith.constant 1 : index
    %c0_179 = arith.constant 0 : index
    %c67_180 = arith.constant 67 : index
    %374 = vector.load %arg7[%c1_178, %c0_179, %c67_180] : memref<2x1x384xf32, #tpu.memory_space<vmem>>, vector<1x1x256xf32>
    %375 = vector.shape_cast %374 : vector<1x1x256xf32> to vector<1x256xf32>
    %c31 = arith.constant 31 : index
    %376 = memref.load %arg5[%c31] : memref<98xf32, #tpu.memory_space<smem>>
    %c80_181 = arith.constant 80 : index
    %377 = memref.load %arg5[%c80_181] : memref<98xf32, #tpu.memory_space<smem>>
    %378 = vector.broadcast %376 : f32 to vector<1x256xf32>
    %379 = arith.mulf %378, %373 : vector<1x256xf32>
    %380 = vector.broadcast %377 : f32 to vector<1x256xf32>
    %381 = arith.mulf %380, %375 : vector<1x256xf32>
    %382 = arith.addf %379, %381 : vector<1x256xf32>
    %383 = arith.mulf %319, %382 : vector<1x256xf32>
    %384 = arith.addf %358, %383 : vector<1x256xf32>
    %c0_182 = arith.constant 0 : index
    %c0_183 = arith.constant 0 : index
    %c83 = arith.constant 83 : index
    %385 = vector.load %arg7[%c0_182, %c0_183, %c83] : memref<2x1x384xf32, #tpu.memory_space<vmem>>, vector<1x1x256xf32>
    %386 = vector.shape_cast %385 : vector<1x1x256xf32> to vector<1x256xf32>
    %c1_184 = arith.constant 1 : index
    %c0_185 = arith.constant 0 : index
    %c83_186 = arith.constant 83 : index
    %387 = vector.load %arg7[%c1_184, %c0_185, %c83_186] : memref<2x1x384xf32, #tpu.memory_space<vmem>>, vector<1x1x256xf32>
    %388 = vector.shape_cast %387 : vector<1x1x256xf32> to vector<1x256xf32>
    %c38 = arith.constant 38 : index
    %389 = memref.load %arg5[%c38] : memref<98xf32, #tpu.memory_space<smem>>
    %c87 = arith.constant 87 : index
    %390 = memref.load %arg5[%c87] : memref<98xf32, #tpu.memory_space<smem>>
    %391 = vector.broadcast %389 : f32 to vector<1x256xf32>
    %392 = arith.mulf %391, %386 : vector<1x256xf32>
    %393 = vector.broadcast %390 : f32 to vector<1x256xf32>
    %394 = arith.mulf %393, %388 : vector<1x256xf32>
    %395 = arith.addf %392, %394 : vector<1x256xf32>
    %396 = arith.mulf %319, %395 : vector<1x256xf32>
    %397 = arith.addf %371, %396 : vector<1x256xf32>
    %c0_187 = arith.constant 0 : index
    %c0_188 = arith.constant 0 : index
    %c99 = arith.constant 99 : index
    %398 = vector.load %arg7[%c0_187, %c0_188, %c99] : memref<2x1x384xf32, #tpu.memory_space<vmem>>, vector<1x1x256xf32>
    %399 = vector.shape_cast %398 : vector<1x1x256xf32> to vector<1x256xf32>
    %c1_189 = arith.constant 1 : index
    %c0_190 = arith.constant 0 : index
    %c99_191 = arith.constant 99 : index
    %400 = vector.load %arg7[%c1_189, %c0_190, %c99_191] : memref<2x1x384xf32, #tpu.memory_space<vmem>>, vector<1x1x256xf32>
    %401 = vector.shape_cast %400 : vector<1x1x256xf32> to vector<1x256xf32>
    %c45 = arith.constant 45 : index
    %402 = memref.load %arg5[%c45] : memref<98xf32, #tpu.memory_space<smem>>
    %c94 = arith.constant 94 : index
    %403 = memref.load %arg5[%c94] : memref<98xf32, #tpu.memory_space<smem>>
    %404 = vector.broadcast %402 : f32 to vector<1x256xf32>
    %405 = arith.mulf %404, %399 : vector<1x256xf32>
    %406 = vector.broadcast %403 : f32 to vector<1x256xf32>
    %407 = arith.mulf %406, %401 : vector<1x256xf32>
    %408 = arith.addf %405, %407 : vector<1x256xf32>
    %409 = arith.mulf %319, %408 : vector<1x256xf32>
    %410 = arith.addf %384, %409 : vector<1x256xf32>
    %c4 = arith.constant 4 : index
    %c0_192 = arith.constant 0 : index
    %411 = vector.load %arg4[%c4, %c0_192] : memref<7x256xf32, #tpu.memory_space<vmem>>, vector<1x256xf32>
    %c0_193 = arith.constant 0 : index
    %c0_194 = arith.constant 0 : index
    %c4_195 = arith.constant 4 : index
    %412 = vector.load %arg7[%c0_193, %c0_194, %c4_195] : memref<2x1x384xf32, #tpu.memory_space<vmem>>, vector<1x1x256xf32>
    %413 = vector.shape_cast %412 : vector<1x1x256xf32> to vector<1x256xf32>
    %c1_196 = arith.constant 1 : index
    %c0_197 = arith.constant 0 : index
    %c4_198 = arith.constant 4 : index
    %414 = vector.load %arg7[%c1_196, %c0_197, %c4_198] : memref<2x1x384xf32, #tpu.memory_space<vmem>>, vector<1x1x256xf32>
    %415 = vector.shape_cast %414 : vector<1x1x256xf32> to vector<1x256xf32>
    %c4_199 = arith.constant 4 : index
    %416 = memref.load %arg5[%c4_199] : memref<98xf32, #tpu.memory_space<smem>>
    %c53 = arith.constant 53 : index
    %417 = memref.load %arg5[%c53] : memref<98xf32, #tpu.memory_space<smem>>
    %418 = vector.broadcast %416 : f32 to vector<1x256xf32>
    %419 = arith.mulf %418, %413 : vector<1x256xf32>
    %420 = vector.broadcast %417 : f32 to vector<1x256xf32>
    %421 = arith.mulf %420, %415 : vector<1x256xf32>
    %422 = arith.addf %419, %421 : vector<1x256xf32>
    %423 = arith.mulf %411, %422 : vector<1x256xf32>
    %424 = arith.addf %318, %423 : vector<1x256xf32>
    %c0_200 = arith.constant 0 : index
    %c0_201 = arith.constant 0 : index
    %c20 = arith.constant 20 : index
    %425 = vector.load %arg7[%c0_200, %c0_201, %c20] : memref<2x1x384xf32, #tpu.memory_space<vmem>>, vector<1x1x256xf32>
    %426 = vector.shape_cast %425 : vector<1x1x256xf32> to vector<1x256xf32>
    %c1_202 = arith.constant 1 : index
    %c0_203 = arith.constant 0 : index
    %c20_204 = arith.constant 20 : index
    %427 = vector.load %arg7[%c1_202, %c0_203, %c20_204] : memref<2x1x384xf32, #tpu.memory_space<vmem>>, vector<1x1x256xf32>
    %428 = vector.shape_cast %427 : vector<1x1x256xf32> to vector<1x256xf32>
    %c11 = arith.constant 11 : index
    %429 = memref.load %arg5[%c11] : memref<98xf32, #tpu.memory_space<smem>>
    %c60 = arith.constant 60 : index
    %430 = memref.load %arg5[%c60] : memref<98xf32, #tpu.memory_space<smem>>
    %431 = vector.broadcast %429 : f32 to vector<1x256xf32>
    %432 = arith.mulf %431, %426 : vector<1x256xf32>
    %433 = vector.broadcast %430 : f32 to vector<1x256xf32>
    %434 = arith.mulf %433, %428 : vector<1x256xf32>
    %435 = arith.addf %432, %434 : vector<1x256xf32>
    %436 = arith.mulf %411, %435 : vector<1x256xf32>
    %437 = arith.addf %305, %436 : vector<1x256xf32>
    %c0_205 = arith.constant 0 : index
    %c0_206 = arith.constant 0 : index
    %c36_207 = arith.constant 36 : index
    %438 = vector.load %arg7[%c0_205, %c0_206, %c36_207] : memref<2x1x384xf32, #tpu.memory_space<vmem>>, vector<1x1x256xf32>
    %439 = vector.shape_cast %438 : vector<1x1x256xf32> to vector<1x256xf32>
    %c1_208 = arith.constant 1 : index
    %c0_209 = arith.constant 0 : index
    %c36_210 = arith.constant 36 : index
    %440 = vector.load %arg7[%c1_208, %c0_209, %c36_210] : memref<2x1x384xf32, #tpu.memory_space<vmem>>, vector<1x1x256xf32>
    %441 = vector.shape_cast %440 : vector<1x1x256xf32> to vector<1x256xf32>
    %c18_211 = arith.constant 18 : index
    %442 = memref.load %arg5[%c18_211] : memref<98xf32, #tpu.memory_space<smem>>
    %c67_212 = arith.constant 67 : index
    %443 = memref.load %arg5[%c67_212] : memref<98xf32, #tpu.memory_space<smem>>
    %444 = vector.broadcast %442 : f32 to vector<1x256xf32>
    %445 = arith.mulf %444, %439 : vector<1x256xf32>
    %446 = vector.broadcast %443 : f32 to vector<1x256xf32>
    %447 = arith.mulf %446, %441 : vector<1x256xf32>
    %448 = arith.addf %445, %447 : vector<1x256xf32>
    %449 = arith.mulf %411, %448 : vector<1x256xf32>
    %450 = arith.addf %424, %449 : vector<1x256xf32>
    %c0_213 = arith.constant 0 : index
    %c0_214 = arith.constant 0 : index
    %c52_215 = arith.constant 52 : index
    %451 = vector.load %arg7[%c0_213, %c0_214, %c52_215] : memref<2x1x384xf32, #tpu.memory_space<vmem>>, vector<1x1x256xf32>
    %452 = vector.shape_cast %451 : vector<1x1x256xf32> to vector<1x256xf32>
    %c1_216 = arith.constant 1 : index
    %c0_217 = arith.constant 0 : index
    %c52_218 = arith.constant 52 : index
    %453 = vector.load %arg7[%c1_216, %c0_217, %c52_218] : memref<2x1x384xf32, #tpu.memory_space<vmem>>, vector<1x1x256xf32>
    %454 = vector.shape_cast %453 : vector<1x1x256xf32> to vector<1x256xf32>
    %c25 = arith.constant 25 : index
    %455 = memref.load %arg5[%c25] : memref<98xf32, #tpu.memory_space<smem>>
    %c74 = arith.constant 74 : index
    %456 = memref.load %arg5[%c74] : memref<98xf32, #tpu.memory_space<smem>>
    %457 = vector.broadcast %455 : f32 to vector<1x256xf32>
    %458 = arith.mulf %457, %452 : vector<1x256xf32>
    %459 = vector.broadcast %456 : f32 to vector<1x256xf32>
    %460 = arith.mulf %459, %454 : vector<1x256xf32>
    %461 = arith.addf %458, %460 : vector<1x256xf32>
    %462 = arith.mulf %411, %461 : vector<1x256xf32>
    %463 = arith.addf %437, %462 : vector<1x256xf32>
    %c0_219 = arith.constant 0 : index
    %c0_220 = arith.constant 0 : index
    %c68 = arith.constant 68 : index
    %464 = vector.load %arg7[%c0_219, %c0_220, %c68] : memref<2x1x384xf32, #tpu.memory_space<vmem>>, vector<1x1x256xf32>
    %465 = vector.shape_cast %464 : vector<1x1x256xf32> to vector<1x256xf32>
    %c1_221 = arith.constant 1 : index
    %c0_222 = arith.constant 0 : index
    %c68_223 = arith.constant 68 : index
    %466 = vector.load %arg7[%c1_221, %c0_222, %c68_223] : memref<2x1x384xf32, #tpu.memory_space<vmem>>, vector<1x1x256xf32>
    %467 = vector.shape_cast %466 : vector<1x1x256xf32> to vector<1x256xf32>
    %c32_224 = arith.constant 32 : index
    %468 = memref.load %arg5[%c32_224] : memref<98xf32, #tpu.memory_space<smem>>
    %c81_225 = arith.constant 81 : index
    %469 = memref.load %arg5[%c81_225] : memref<98xf32, #tpu.memory_space<smem>>
    %470 = vector.broadcast %468 : f32 to vector<1x256xf32>
    %471 = arith.mulf %470, %465 : vector<1x256xf32>
    %472 = vector.broadcast %469 : f32 to vector<1x256xf32>
    %473 = arith.mulf %472, %467 : vector<1x256xf32>
    %474 = arith.addf %471, %473 : vector<1x256xf32>
    %475 = arith.mulf %411, %474 : vector<1x256xf32>
    %476 = arith.addf %450, %475 : vector<1x256xf32>
    %c0_226 = arith.constant 0 : index
    %c0_227 = arith.constant 0 : index
    %c84_228 = arith.constant 84 : index
    %477 = vector.load %arg7[%c0_226, %c0_227, %c84_228] : memref<2x1x384xf32, #tpu.memory_space<vmem>>, vector<1x1x256xf32>
    %478 = vector.shape_cast %477 : vector<1x1x256xf32> to vector<1x256xf32>
    %c1_229 = arith.constant 1 : index
    %c0_230 = arith.constant 0 : index
    %c84_231 = arith.constant 84 : index
    %479 = vector.load %arg7[%c1_229, %c0_230, %c84_231] : memref<2x1x384xf32, #tpu.memory_space<vmem>>, vector<1x1x256xf32>
    %480 = vector.shape_cast %479 : vector<1x1x256xf32> to vector<1x256xf32>
    %c39 = arith.constant 39 : index
    %481 = memref.load %arg5[%c39] : memref<98xf32, #tpu.memory_space<smem>>
    %c88 = arith.constant 88 : index
    %482 = memref.load %arg5[%c88] : memref<98xf32, #tpu.memory_space<smem>>
    %483 = vector.broadcast %481 : f32 to vector<1x256xf32>
    %484 = arith.mulf %483, %478 : vector<1x256xf32>
    %485 = vector.broadcast %482 : f32 to vector<1x256xf32>
    %486 = arith.mulf %485, %480 : vector<1x256xf32>
    %487 = arith.addf %484, %486 : vector<1x256xf32>
    %488 = arith.mulf %411, %487 : vector<1x256xf32>
    %489 = arith.addf %463, %488 : vector<1x256xf32>
    %c0_232 = arith.constant 0 : index
    %c0_233 = arith.constant 0 : index
    %c100 = arith.constant 100 : index
    %490 = vector.load %arg7[%c0_232, %c0_233, %c100] : memref<2x1x384xf32, #tpu.memory_space<vmem>>, vector<1x1x256xf32>
    %491 = vector.shape_cast %490 : vector<1x1x256xf32> to vector<1x256xf32>
    %c1_234 = arith.constant 1 : index
    %c0_235 = arith.constant 0 : index
    %c100_236 = arith.constant 100 : index
    %492 = vector.load %arg7[%c1_234, %c0_235, %c100_236] : memref<2x1x384xf32, #tpu.memory_space<vmem>>, vector<1x1x256xf32>
    %493 = vector.shape_cast %492 : vector<1x1x256xf32> to vector<1x256xf32>
    %c46 = arith.constant 46 : index
    %494 = memref.load %arg5[%c46] : memref<98xf32, #tpu.memory_space<smem>>
    %c95 = arith.constant 95 : index
    %495 = memref.load %arg5[%c95] : memref<98xf32, #tpu.memory_space<smem>>
    %496 = vector.broadcast %494 : f32 to vector<1x256xf32>
    %497 = arith.mulf %496, %491 : vector<1x256xf32>
    %498 = vector.broadcast %495 : f32 to vector<1x256xf32>
    %499 = arith.mulf %498, %493 : vector<1x256xf32>
    %500 = arith.addf %497, %499 : vector<1x256xf32>
    %501 = arith.mulf %411, %500 : vector<1x256xf32>
    %502 = arith.addf %476, %501 : vector<1x256xf32>
    %c5 = arith.constant 5 : index
    %c0_237 = arith.constant 0 : index
    %503 = vector.load %arg4[%c5, %c0_237] : memref<7x256xf32, #tpu.memory_space<vmem>>, vector<1x256xf32>
    %c0_238 = arith.constant 0 : index
    %c0_239 = arith.constant 0 : index
    %c5_240 = arith.constant 5 : index
    %504 = vector.load %arg7[%c0_238, %c0_239, %c5_240] : memref<2x1x384xf32, #tpu.memory_space<vmem>>, vector<1x1x256xf32>
    %505 = vector.shape_cast %504 : vector<1x1x256xf32> to vector<1x256xf32>
    %c1_241 = arith.constant 1 : index
    %c0_242 = arith.constant 0 : index
    %c5_243 = arith.constant 5 : index
    %506 = vector.load %arg7[%c1_241, %c0_242, %c5_243] : memref<2x1x384xf32, #tpu.memory_space<vmem>>, vector<1x1x256xf32>
    %507 = vector.shape_cast %506 : vector<1x1x256xf32> to vector<1x256xf32>
    %c5_244 = arith.constant 5 : index
    %508 = memref.load %arg5[%c5_244] : memref<98xf32, #tpu.memory_space<smem>>
    %c54 = arith.constant 54 : index
    %509 = memref.load %arg5[%c54] : memref<98xf32, #tpu.memory_space<smem>>
    %510 = vector.broadcast %508 : f32 to vector<1x256xf32>
    %511 = arith.mulf %510, %505 : vector<1x256xf32>
    %512 = vector.broadcast %509 : f32 to vector<1x256xf32>
    %513 = arith.mulf %512, %507 : vector<1x256xf32>
    %514 = arith.addf %511, %513 : vector<1x256xf32>
    %515 = arith.mulf %503, %514 : vector<1x256xf32>
    %516 = arith.addf %410, %515 : vector<1x256xf32>
    %c0_245 = arith.constant 0 : index
    %c0_246 = arith.constant 0 : index
    %c21_247 = arith.constant 21 : index
    %517 = vector.load %arg7[%c0_245, %c0_246, %c21_247] : memref<2x1x384xf32, #tpu.memory_space<vmem>>, vector<1x1x256xf32>
    %518 = vector.shape_cast %517 : vector<1x1x256xf32> to vector<1x256xf32>
    %c1_248 = arith.constant 1 : index
    %c0_249 = arith.constant 0 : index
    %c21_250 = arith.constant 21 : index
    %519 = vector.load %arg7[%c1_248, %c0_249, %c21_250] : memref<2x1x384xf32, #tpu.memory_space<vmem>>, vector<1x1x256xf32>
    %520 = vector.shape_cast %519 : vector<1x1x256xf32> to vector<1x256xf32>
    %c12 = arith.constant 12 : index
    %521 = memref.load %arg5[%c12] : memref<98xf32, #tpu.memory_space<smem>>
    %c61 = arith.constant 61 : index
    %522 = memref.load %arg5[%c61] : memref<98xf32, #tpu.memory_space<smem>>
    %523 = vector.broadcast %521 : f32 to vector<1x256xf32>
    %524 = arith.mulf %523, %518 : vector<1x256xf32>
    %525 = vector.broadcast %522 : f32 to vector<1x256xf32>
    %526 = arith.mulf %525, %520 : vector<1x256xf32>
    %527 = arith.addf %524, %526 : vector<1x256xf32>
    %528 = arith.mulf %503, %527 : vector<1x256xf32>
    %529 = arith.addf %397, %528 : vector<1x256xf32>
    %c0_251 = arith.constant 0 : index
    %c0_252 = arith.constant 0 : index
    %c37_253 = arith.constant 37 : index
    %530 = vector.load %arg7[%c0_251, %c0_252, %c37_253] : memref<2x1x384xf32, #tpu.memory_space<vmem>>, vector<1x1x256xf32>
    %531 = vector.shape_cast %530 : vector<1x1x256xf32> to vector<1x256xf32>
    %c1_254 = arith.constant 1 : index
    %c0_255 = arith.constant 0 : index
    %c37_256 = arith.constant 37 : index
    %532 = vector.load %arg7[%c1_254, %c0_255, %c37_256] : memref<2x1x384xf32, #tpu.memory_space<vmem>>, vector<1x1x256xf32>
    %533 = vector.shape_cast %532 : vector<1x1x256xf32> to vector<1x256xf32>
    %c19_257 = arith.constant 19 : index
    %534 = memref.load %arg5[%c19_257] : memref<98xf32, #tpu.memory_space<smem>>
    %c68_258 = arith.constant 68 : index
    %535 = memref.load %arg5[%c68_258] : memref<98xf32, #tpu.memory_space<smem>>
    %536 = vector.broadcast %534 : f32 to vector<1x256xf32>
    %537 = arith.mulf %536, %531 : vector<1x256xf32>
    %538 = vector.broadcast %535 : f32 to vector<1x256xf32>
    %539 = arith.mulf %538, %533 : vector<1x256xf32>
    %540 = arith.addf %537, %539 : vector<1x256xf32>
    %541 = arith.mulf %503, %540 : vector<1x256xf32>
    %542 = arith.addf %516, %541 : vector<1x256xf32>
    %c0_259 = arith.constant 0 : index
    %c0_260 = arith.constant 0 : index
    %c53_261 = arith.constant 53 : index
    %543 = vector.load %arg7[%c0_259, %c0_260, %c53_261] : memref<2x1x384xf32, #tpu.memory_space<vmem>>, vector<1x1x256xf32>
    %544 = vector.shape_cast %543 : vector<1x1x256xf32> to vector<1x256xf32>
    %c1_262 = arith.constant 1 : index
    %c0_263 = arith.constant 0 : index
    %c53_264 = arith.constant 53 : index
    %545 = vector.load %arg7[%c1_262, %c0_263, %c53_264] : memref<2x1x384xf32, #tpu.memory_space<vmem>>, vector<1x1x256xf32>
    %546 = vector.shape_cast %545 : vector<1x1x256xf32> to vector<1x256xf32>
    %c26 = arith.constant 26 : index
    %547 = memref.load %arg5[%c26] : memref<98xf32, #tpu.memory_space<smem>>
    %c75 = arith.constant 75 : index
    %548 = memref.load %arg5[%c75] : memref<98xf32, #tpu.memory_space<smem>>
    %549 = vector.broadcast %547 : f32 to vector<1x256xf32>
    %550 = arith.mulf %549, %544 : vector<1x256xf32>
    %551 = vector.broadcast %548 : f32 to vector<1x256xf32>
    %552 = arith.mulf %551, %546 : vector<1x256xf32>
    %553 = arith.addf %550, %552 : vector<1x256xf32>
    %554 = arith.mulf %503, %553 : vector<1x256xf32>
    %555 = arith.addf %529, %554 : vector<1x256xf32>
    %c0_265 = arith.constant 0 : index
    %c0_266 = arith.constant 0 : index
    %c69 = arith.constant 69 : index
    %556 = vector.load %arg7[%c0_265, %c0_266, %c69] : memref<2x1x384xf32, #tpu.memory_space<vmem>>, vector<1x1x256xf32>
    %557 = vector.shape_cast %556 : vector<1x1x256xf32> to vector<1x256xf32>
    %c1_267 = arith.constant 1 : index
    %c0_268 = arith.constant 0 : index
    %c69_269 = arith.constant 69 : index
    %558 = vector.load %arg7[%c1_267, %c0_268, %c69_269] : memref<2x1x384xf32, #tpu.memory_space<vmem>>, vector<1x1x256xf32>
    %559 = vector.shape_cast %558 : vector<1x1x256xf32> to vector<1x256xf32>
    %c33_270 = arith.constant 33 : index
    %560 = memref.load %arg5[%c33_270] : memref<98xf32, #tpu.memory_space<smem>>
    %c82_271 = arith.constant 82 : index
    %561 = memref.load %arg5[%c82_271] : memref<98xf32, #tpu.memory_space<smem>>
    %562 = vector.broadcast %560 : f32 to vector<1x256xf32>
    %563 = arith.mulf %562, %557 : vector<1x256xf32>
    %564 = vector.broadcast %561 : f32 to vector<1x256xf32>
    %565 = arith.mulf %564, %559 : vector<1x256xf32>
    %566 = arith.addf %563, %565 : vector<1x256xf32>
    %567 = arith.mulf %503, %566 : vector<1x256xf32>
    %568 = arith.addf %542, %567 : vector<1x256xf32>
    %c0_272 = arith.constant 0 : index
    %c0_273 = arith.constant 0 : index
    %c85_274 = arith.constant 85 : index
    %569 = vector.load %arg7[%c0_272, %c0_273, %c85_274] : memref<2x1x384xf32, #tpu.memory_space<vmem>>, vector<1x1x256xf32>
    %570 = vector.shape_cast %569 : vector<1x1x256xf32> to vector<1x256xf32>
    %c1_275 = arith.constant 1 : index
    %c0_276 = arith.constant 0 : index
    %c85_277 = arith.constant 85 : index
    %571 = vector.load %arg7[%c1_275, %c0_276, %c85_277] : memref<2x1x384xf32, #tpu.memory_space<vmem>>, vector<1x1x256xf32>
    %572 = vector.shape_cast %571 : vector<1x1x256xf32> to vector<1x256xf32>
    %c40 = arith.constant 40 : index
    %573 = memref.load %arg5[%c40] : memref<98xf32, #tpu.memory_space<smem>>
    %c89 = arith.constant 89 : index
    %574 = memref.load %arg5[%c89] : memref<98xf32, #tpu.memory_space<smem>>
    %575 = vector.broadcast %573 : f32 to vector<1x256xf32>
    %576 = arith.mulf %575, %570 : vector<1x256xf32>
    %577 = vector.broadcast %574 : f32 to vector<1x256xf32>
    %578 = arith.mulf %577, %572 : vector<1x256xf32>
    %579 = arith.addf %576, %578 : vector<1x256xf32>
    %580 = arith.mulf %503, %579 : vector<1x256xf32>
    %581 = arith.addf %555, %580 : vector<1x256xf32>
    %c0_278 = arith.constant 0 : index
    %c0_279 = arith.constant 0 : index
    %c101 = arith.constant 101 : index
    %582 = vector.load %arg7[%c0_278, %c0_279, %c101] : memref<2x1x384xf32, #tpu.memory_space<vmem>>, vector<1x1x256xf32>
    %583 = vector.shape_cast %582 : vector<1x1x256xf32> to vector<1x256xf32>
    %c1_280 = arith.constant 1 : index
    %c0_281 = arith.constant 0 : index
    %c101_282 = arith.constant 101 : index
    %584 = vector.load %arg7[%c1_280, %c0_281, %c101_282] : memref<2x1x384xf32, #tpu.memory_space<vmem>>, vector<1x1x256xf32>
    %585 = vector.shape_cast %584 : vector<1x1x256xf32> to vector<1x256xf32>
    %c47 = arith.constant 47 : index
    %586 = memref.load %arg5[%c47] : memref<98xf32, #tpu.memory_space<smem>>
    %c96_283 = arith.constant 96 : index
    %587 = memref.load %arg5[%c96_283] : memref<98xf32, #tpu.memory_space<smem>>
    %588 = vector.broadcast %586 : f32 to vector<1x256xf32>
    %589 = arith.mulf %588, %583 : vector<1x256xf32>
    %590 = vector.broadcast %587 : f32 to vector<1x256xf32>
    %591 = arith.mulf %590, %585 : vector<1x256xf32>
    %592 = arith.addf %589, %591 : vector<1x256xf32>
    %593 = arith.mulf %503, %592 : vector<1x256xf32>
    %594 = arith.addf %568, %593 : vector<1x256xf32>
    %c6 = arith.constant 6 : index
    %c0_284 = arith.constant 0 : index
    %595 = vector.load %arg4[%c6, %c0_284] : memref<7x256xf32, #tpu.memory_space<vmem>>, vector<1x256xf32>
    %c0_285 = arith.constant 0 : index
    %c0_286 = arith.constant 0 : index
    %c6_287 = arith.constant 6 : index
    %596 = vector.load %arg7[%c0_285, %c0_286, %c6_287] : memref<2x1x384xf32, #tpu.memory_space<vmem>>, vector<1x1x256xf32>
    %597 = vector.shape_cast %596 : vector<1x1x256xf32> to vector<1x256xf32>
    %c1_288 = arith.constant 1 : index
    %c0_289 = arith.constant 0 : index
    %c6_290 = arith.constant 6 : index
    %598 = vector.load %arg7[%c1_288, %c0_289, %c6_290] : memref<2x1x384xf32, #tpu.memory_space<vmem>>, vector<1x1x256xf32>
    %599 = vector.shape_cast %598 : vector<1x1x256xf32> to vector<1x256xf32>
    %c6_291 = arith.constant 6 : index
    %600 = memref.load %arg5[%c6_291] : memref<98xf32, #tpu.memory_space<smem>>
    %c55 = arith.constant 55 : index
    %601 = memref.load %arg5[%c55] : memref<98xf32, #tpu.memory_space<smem>>
    %602 = vector.broadcast %600 : f32 to vector<1x256xf32>
    %603 = arith.mulf %602, %597 : vector<1x256xf32>
    %604 = vector.broadcast %601 : f32 to vector<1x256xf32>
    %605 = arith.mulf %604, %599 : vector<1x256xf32>
    %606 = arith.addf %603, %605 : vector<1x256xf32>
    %607 = arith.mulf %595, %606 : vector<1x256xf32>
    %608 = arith.addf %502, %607 : vector<1x256xf32>
    %c0_292 = arith.constant 0 : index
    %c0_293 = arith.constant 0 : index
    %c22_294 = arith.constant 22 : index
    %609 = vector.load %arg7[%c0_292, %c0_293, %c22_294] : memref<2x1x384xf32, #tpu.memory_space<vmem>>, vector<1x1x256xf32>
    %610 = vector.shape_cast %609 : vector<1x1x256xf32> to vector<1x256xf32>
    %c1_295 = arith.constant 1 : index
    %c0_296 = arith.constant 0 : index
    %c22_297 = arith.constant 22 : index
    %611 = vector.load %arg7[%c1_295, %c0_296, %c22_297] : memref<2x1x384xf32, #tpu.memory_space<vmem>>, vector<1x1x256xf32>
    %612 = vector.shape_cast %611 : vector<1x1x256xf32> to vector<1x256xf32>
    %c13 = arith.constant 13 : index
    %613 = memref.load %arg5[%c13] : memref<98xf32, #tpu.memory_space<smem>>
    %c62 = arith.constant 62 : index
    %614 = memref.load %arg5[%c62] : memref<98xf32, #tpu.memory_space<smem>>
    %615 = vector.broadcast %613 : f32 to vector<1x256xf32>
    %616 = arith.mulf %615, %610 : vector<1x256xf32>
    %617 = vector.broadcast %614 : f32 to vector<1x256xf32>
    %618 = arith.mulf %617, %612 : vector<1x256xf32>
    %619 = arith.addf %616, %618 : vector<1x256xf32>
    %620 = arith.mulf %595, %619 : vector<1x256xf32>
    %621 = arith.addf %489, %620 : vector<1x256xf32>
    %c0_298 = arith.constant 0 : index
    %c0_299 = arith.constant 0 : index
    %c38_300 = arith.constant 38 : index
    %622 = vector.load %arg7[%c0_298, %c0_299, %c38_300] : memref<2x1x384xf32, #tpu.memory_space<vmem>>, vector<1x1x256xf32>
    %623 = vector.shape_cast %622 : vector<1x1x256xf32> to vector<1x256xf32>
    %c1_301 = arith.constant 1 : index
    %c0_302 = arith.constant 0 : index
    %c38_303 = arith.constant 38 : index
    %624 = vector.load %arg7[%c1_301, %c0_302, %c38_303] : memref<2x1x384xf32, #tpu.memory_space<vmem>>, vector<1x1x256xf32>
    %625 = vector.shape_cast %624 : vector<1x1x256xf32> to vector<1x256xf32>
    %c20_304 = arith.constant 20 : index
    %626 = memref.load %arg5[%c20_304] : memref<98xf32, #tpu.memory_space<smem>>
    %c69_305 = arith.constant 69 : index
    %627 = memref.load %arg5[%c69_305] : memref<98xf32, #tpu.memory_space<smem>>
    %628 = vector.broadcast %626 : f32 to vector<1x256xf32>
    %629 = arith.mulf %628, %623 : vector<1x256xf32>
    %630 = vector.broadcast %627 : f32 to vector<1x256xf32>
    %631 = arith.mulf %630, %625 : vector<1x256xf32>
    %632 = arith.addf %629, %631 : vector<1x256xf32>
    %633 = arith.mulf %595, %632 : vector<1x256xf32>
    %634 = arith.addf %608, %633 : vector<1x256xf32>
    %c0_306 = arith.constant 0 : index
    %c0_307 = arith.constant 0 : index
    %c54_308 = arith.constant 54 : index
    %635 = vector.load %arg7[%c0_306, %c0_307, %c54_308] : memref<2x1x384xf32, #tpu.memory_space<vmem>>, vector<1x1x256xf32>
    %636 = vector.shape_cast %635 : vector<1x1x256xf32> to vector<1x256xf32>
    %c1_309 = arith.constant 1 : index
    %c0_310 = arith.constant 0 : index
    %c54_311 = arith.constant 54 : index
    %637 = vector.load %arg7[%c1_309, %c0_310, %c54_311] : memref<2x1x384xf32, #tpu.memory_space<vmem>>, vector<1x1x256xf32>
    %638 = vector.shape_cast %637 : vector<1x1x256xf32> to vector<1x256xf32>
    %c27 = arith.constant 27 : index
    %639 = memref.load %arg5[%c27] : memref<98xf32, #tpu.memory_space<smem>>
    %c76 = arith.constant 76 : index
    %640 = memref.load %arg5[%c76] : memref<98xf32, #tpu.memory_space<smem>>
    %641 = vector.broadcast %639 : f32 to vector<1x256xf32>
    %642 = arith.mulf %641, %636 : vector<1x256xf32>
    %643 = vector.broadcast %640 : f32 to vector<1x256xf32>
    %644 = arith.mulf %643, %638 : vector<1x256xf32>
    %645 = arith.addf %642, %644 : vector<1x256xf32>
    %646 = arith.mulf %595, %645 : vector<1x256xf32>
    %647 = arith.addf %621, %646 : vector<1x256xf32>
    %c0_312 = arith.constant 0 : index
    %c0_313 = arith.constant 0 : index
    %c70_314 = arith.constant 70 : index
    %648 = vector.load %arg7[%c0_312, %c0_313, %c70_314] : memref<2x1x384xf32, #tpu.memory_space<vmem>>, vector<1x1x256xf32>
    %649 = vector.shape_cast %648 : vector<1x1x256xf32> to vector<1x256xf32>
    %c1_315 = arith.constant 1 : index
    %c0_316 = arith.constant 0 : index
    %c70_317 = arith.constant 70 : index
    %650 = vector.load %arg7[%c1_315, %c0_316, %c70_317] : memref<2x1x384xf32, #tpu.memory_space<vmem>>, vector<1x1x256xf32>
    %651 = vector.shape_cast %650 : vector<1x1x256xf32> to vector<1x256xf32>
    %c34_318 = arith.constant 34 : index
    %652 = memref.load %arg5[%c34_318] : memref<98xf32, #tpu.memory_space<smem>>
    %c83_319 = arith.constant 83 : index
    %653 = memref.load %arg5[%c83_319] : memref<98xf32, #tpu.memory_space<smem>>
    %654 = vector.broadcast %652 : f32 to vector<1x256xf32>
    %655 = arith.mulf %654, %649 : vector<1x256xf32>
    %656 = vector.broadcast %653 : f32 to vector<1x256xf32>
    %657 = arith.mulf %656, %651 : vector<1x256xf32>
    %658 = arith.addf %655, %657 : vector<1x256xf32>
    %659 = arith.mulf %595, %658 : vector<1x256xf32>
    %660 = arith.addf %634, %659 : vector<1x256xf32>
    %c0_320 = arith.constant 0 : index
    %c0_321 = arith.constant 0 : index
    %c86_322 = arith.constant 86 : index
    %661 = vector.load %arg7[%c0_320, %c0_321, %c86_322] : memref<2x1x384xf32, #tpu.memory_space<vmem>>, vector<1x1x256xf32>
    %662 = vector.shape_cast %661 : vector<1x1x256xf32> to vector<1x256xf32>
    %c1_323 = arith.constant 1 : index
    %c0_324 = arith.constant 0 : index
    %c86_325 = arith.constant 86 : index
    %663 = vector.load %arg7[%c1_323, %c0_324, %c86_325] : memref<2x1x384xf32, #tpu.memory_space<vmem>>, vector<1x1x256xf32>
    %664 = vector.shape_cast %663 : vector<1x1x256xf32> to vector<1x256xf32>
    %c41 = arith.constant 41 : index
    %665 = memref.load %arg5[%c41] : memref<98xf32, #tpu.memory_space<smem>>
    %c90 = arith.constant 90 : index
    %666 = memref.load %arg5[%c90] : memref<98xf32, #tpu.memory_space<smem>>
    %667 = vector.broadcast %665 : f32 to vector<1x256xf32>
    %668 = arith.mulf %667, %662 : vector<1x256xf32>
    %669 = vector.broadcast %666 : f32 to vector<1x256xf32>
    %670 = arith.mulf %669, %664 : vector<1x256xf32>
    %671 = arith.addf %668, %670 : vector<1x256xf32>
    %672 = arith.mulf %595, %671 : vector<1x256xf32>
    %673 = arith.addf %647, %672 : vector<1x256xf32>
    %c0_326 = arith.constant 0 : index
    %c0_327 = arith.constant 0 : index
    %c102 = arith.constant 102 : index
    %674 = vector.load %arg7[%c0_326, %c0_327, %c102] : memref<2x1x384xf32, #tpu.memory_space<vmem>>, vector<1x1x256xf32>
    %675 = vector.shape_cast %674 : vector<1x1x256xf32> to vector<1x256xf32>
    %c1_328 = arith.constant 1 : index
    %c0_329 = arith.constant 0 : index
    %c102_330 = arith.constant 102 : index
    %676 = vector.load %arg7[%c1_328, %c0_329, %c102_330] : memref<2x1x384xf32, #tpu.memory_space<vmem>>, vector<1x1x256xf32>
    %677 = vector.shape_cast %676 : vector<1x1x256xf32> to vector<1x256xf32>
    %c48_331 = arith.constant 48 : index
    %678 = memref.load %arg5[%c48_331] : memref<98xf32, #tpu.memory_space<smem>>
    %c97_332 = arith.constant 97 : index
    %679 = memref.load %arg5[%c97_332] : memref<98xf32, #tpu.memory_space<smem>>
    %680 = vector.broadcast %678 : f32 to vector<1x256xf32>
    %681 = arith.mulf %680, %675 : vector<1x256xf32>
    %682 = vector.broadcast %679 : f32 to vector<1x256xf32>
    %683 = arith.mulf %682, %677 : vector<1x256xf32>
    %684 = arith.addf %681, %683 : vector<1x256xf32>
    %685 = arith.mulf %595, %684 : vector<1x256xf32>
    %686 = arith.addf %660, %685 : vector<1x256xf32>
    %687 = arith.addf %686, %594 : vector<1x256xf32>
    %688 = arith.addf %673, %581 : vector<1x256xf32>
    %689 = arith.addf %687, %688 : vector<1x256xf32>
    %690 = arith.negf %689 : vector<1x256xf32>
    %691 = math.exp %690 : vector<1x256xf32>
    %cst_333 = arith.constant 1.000000e+00 : f32
    %692 = vector.broadcast %cst_333 : f32 to vector<1x256xf32>
    %693 = arith.addf %692, %691 : vector<1x256xf32>
    %694 = arith.divf %692, %693 : vector<1x256xf32>
    %695 = vector.broadcast %694 : vector<1x256xf32> to vector<4x256xf32>
    %696 = arith.mulf %24, %695 : vector<4x256xf32>
    %c0_334 = arith.constant 0 : index
    %c0_335 = arith.constant 0 : index
    %c0_336 = arith.constant 0 : index
    %697 = vector.load %arg6[%c0_334, %c0_335, %c0_336] : memref<1x4x256xf32, #tpu.memory_space<vmem>>, vector<1x4x256xf32>
    %698 = vector.shape_cast %697 : vector<1x4x256xf32> to vector<4x256xf32>
    %699 = vector.shape_cast %696 : vector<4x256xf32> to vector<1x4x256xf32>
    tpu.vector_store %arg6[%c0_334, %c0_335, %c0_336], %699 {strides = array<i32>} : memref<1x4x256xf32, #tpu.memory_space<vmem>>, vector<1x4x256xf32>,
    return
  }
  func.func @transform_0(%arg0: i32) -> (i32, i32, i32) {
    %c0_i32 = arith.constant 0 : i32
    %c0_i32_0 = arith.constant 0 : i32
    %c0_i32_1 = arith.constant 0 : i32
    return %arg0, %c0_i32, %c0_i32_0 : i32, i32, i32
  }
  func.func @transform_1(%arg0: i32) -> (i32, i32) {
    %c0_i32 = arith.constant 0 : i32
    %c0_i32_0 = arith.constant 0 : i32
    %c0_i32_1 = arith.constant 0 : i32
    return %c0_i32, %c0_i32_0 : i32, i32
  }
  func.func @transform_2(%arg0: i32) -> (i32, i32) {
    %c0_i32 = arith.constant 0 : i32
    %c0_i32_0 = arith.constant 0 : i32
    %c0_i32_1 = arith.constant 0 : i32
    return %c0_i32, %c0_i32_0 : i32, i32
  }
  func.func @transform_3(%arg0: i32) -> (i32, i32) {
    %c0_i32 = arith.constant 0 : i32
    %c0_i32_0 = arith.constant 0 : i32
    %c0_i32_1 = arith.constant 0 : i32
    return %c0_i32, %c0_i32_0 : i32, i32
  }
  func.func @transform_4(%arg0: i32) -> i32 {
    %c0_i32 = arith.constant 0 : i32
    %c0_i32_0 = arith.constant 0 : i32
    return %c0_i32 : i32
  }
  func.func @transform_5(%arg0: i32) -> (i32, i32, i32) {
    %c0_i32 = arith.constant 0 : i32
    %c0_i32_0 = arith.constant 0 : i32
    %c0_i32_1 = arith.constant 0 : i32
    return %arg0, %c0_i32, %c0_i32_0 : i32, i32, i32
  }
}

</mosaic_0001>

<llo_original>
// kernel: tpu_custom_call.1
$region0: #{tpu_custom_call.1}
  #allocation0 [shape = 'u32[]', space=smem, size = 0x4, offset = 0x4, fixed_abs, tag = 'smem constant byte address 0x4 - core index']
  #allocation1 [shape = 'u32[72,128]{1,0:T(1,128)}', space=vmem, size = 0x9000, scoped, tag = 'internal scratch']
  #allocation2 [shape = 'f32[2,1,384]{2,1,0:T(1,128)}', space=vmem, size = 0xc00, scoped, tag = 'scratch operand']
  %s0 = inlined_call_operand.hbm [shape: f32[2,4,256], index: 0, kind: input, shape index: {}]
  %s1 = inlined_call_operand.vmem [shape: f32[8,4], index: 1, kind: input, shape index: {}]
  %s2 = inlined_call_operand.vmem [shape: f32[4,8], index: 2, kind: input, shape index: {}]
  %s3 = inlined_call_operand.hbm [shape: f32[7,256], index: 3, kind: input, shape index: {}]
  %s4 = inlined_call_operand.vmem [shape: f32[98], index: 4, kind: input, shape index: {}]
  %s5 = inlined_call_operand.hbm [shape: f32[2,4,256], index: 5, kind: output, shape index: {}]
  %s6 = sld [smem:[#allocation0]]
  $region65: #{tpu_custom_call.1} parent=0
    _
  %s8 = ssub.s32 1, %s6
  %s9 = scalar_select 0, %s8, %s6
  $region1: #{tpu_custom_call.1} parent=0
    #allocation3 [shape = 'u8[8192]{0}', space=vmem, size = 0x2000, scoped, tag = 'input window, operand 0']
    #allocation4 [shape = 's32[2]{0}', space=sflag, size = 0x8, scoped, tag = 'scoped memory for tpu_custom_call.1']
    #allocation5 [shape = 's32[2]{0}', space=sflag, size = 0x8, scoped, tag = 'scoped memory for tpu_custom_call.1']
    #allocation6 [shape = 's32[2]{0}', space=sflag, size = 0x8, scoped, tag = 'scoped memory for tpu_custom_call.1']
    #allocation7 [shape = 'u8[8192]{0}', space=vmem, size = 0x2000, scoped, tag = 'input window, operand 3, single buffered']
    #allocation8 [shape = 's32[1]{0}', space=sflag, size = 0x4, scoped, tag = 'scoped memory for tpu_custom_call.1']
    #allocation9 [shape = 'u8[512]{0}', space=smem, size = 0x200, scoped, tag = 'input window, operand 4, single buffered']
    #allocation10 [shape = 'u8[8192]{0}', space=vmem, size = 0x2000, scoped, tag = 'output window, operand 0']
    %10 = vsyncpa [#allocation4], 0
    %s11 = scalar_lea.sflag [#allocation4], 1
    %12 = vsyncpa %s11, 0
    %13 = vsyncpa [#allocation8], 0
    %14 = vsyncpa [#allocation6], 0
    %15 = vsyncpa [#allocation5], 0
    %s16 = scalar_lea.sflag [#allocation5], 1
    %17 = vsyncpa %s16, 0
    loop: start=0, step=1, limit=4
    $region2: #{tpu_custom_call.1} parent=1 // loop_pre_header
      _
    $region3: #{tpu_custom_call.1} parent=1 // loop_header
      %s19 = sphi 0, %s23
      %p20 = scmp.ge.s32.totalorder %s19, 4
      %s29 = sphi 0, %s31
      %s32 = sphi 0, %s29
      %s33 = sphi 0, %s32
      %s49 = sphi 0, %s33
      %s53 = sphi 0, %s53
      %s55 = sphi 0, %s53
      %s56 = sphi 0, %s55
      %s70 = sphi 0, %s56
      %s74 = sphi 0, %s74
      %s76 = sphi 0, %s74
      %s77 = sphi 0, %s76
      %s91 = sphi 0, %s77
      %s95 = sphi 0, %s95
      %s97 = sphi 0, %s95
      %s98 = sphi 0, %s97
      %s112 = sphi 0, %s98
      %s116 = sphi 0, %s116
      %s118 = sphi 0, %s116
      %s119 = sphi 0, %s118
      %s133 = sphi 0, %s119
      %s139 = sphi 0, %s141
      %s142 = sphi 0, %s139
      %s143 = sphi 0, %s142
      %s159 = sphi 0, %s143
    $region4: #{tpu_custom_call.1} parent=1 // loop_header_branch
      %22 = sbr.rel (%p20) target = $region8
    $region5: #{tpu_custom_call.1} parent=1 // loop_body
      %s24 = ssub.s32 %s19, 1
      %s25 = ssub.s32 %s19, 2
      %s26 = sadd.s32 %s19, 1
      %s27 = ssub.s32 %s19, %s26
      %p28 = scmp.eq.s32.totalorder %s27, 0
      %s30 = sadd.s32 %s29, 1
      %s31 = scalar_select %p28, %s29, %s30
      %p34 = pneg %p28
      %p35 = scmp.eq.s32.totalorder %s19, 1
      %p36 = por %p34, %p35
      %p37 = scmp.ne.s32.totalorder %s29, %s32
      %p38 = scmp.eq.s32.totalorder %s19, 0
      %p39 = por %p37, %p38
      %p40 = scmp.ne.s32.totalorder %s29, %s32
      %p41 = scmp.eq.s32.totalorder %s24, 1
      %p42 = por %p40, %p41
      %p43 = scmp.ne.s32.totalorder %s32, %s33
      %p44 = scmp.eq.s32.totalorder %s24, 0
      %p45 = por %p43, %p44
      %p46 = scmp.ne.s32.totalorder %s32, %s33
      %p47 = scmp.eq.s32.totalorder %s25, 1
      %p48 = por %p46, %p47
      %p50 = scmp.ne.s32.totalorder %s33, %s49
      %p51 = scmp.eq.s32.totalorder %s25, 0
      %p52 = por %p50, %p51
      %s54 = sadd.s32 %s53, 1
      %p57 = scmp.eq.s32.totalorder %s19, 1
      %p58 = scmp.ne.s32.totalorder %s53, %s55
      %p59 = scmp.eq.s32.totalorder %s19, 0
      %p60 = por %p58, %p59
      %p61 = scmp.ne.s32.totalorder %s53, %s55
      %p62 = scmp.eq.s32.totalorder %s24, 1
      %p63 = por %p61, %p62
      %p64 = scmp.ne.s32.totalorder %s55, %s56
      %p65 = scmp.eq.s32.totalorder %s24, 0
      %p66 = por %p64, %p65
      %p67 = scmp.ne.s32.totalorder %s55, %s56
      %p68 = scmp.eq.s32.totalorder %s25, 1
      %p69 = por %p67, %p68
      %p71 = scmp.ne.s32.totalorder %s56, %s70
      %p72 = scmp.eq.s32.totalorder %s25, 0
      %p73 = por %p71, %p72
      %s75 = sadd.s32 %s74, 1
      %p78 = scmp.eq.s32.totalorder %s19, 1
      %p79 = scmp.ne.s32.totalorder %s74, %s76
      %p80 = scmp.eq.s32.totalorder %s19, 0
      %p81 = por %p79, %p80
      %p82 = scmp.ne.s32.totalorder %s74, %s76
      %p83 = scmp.eq.s32.totalorder %s24, 1
      %p84 = por %p82, %p83
      %p85 = scmp.ne.s32.totalorder %s76, %s77
      %p86 = scmp.eq.s32.totalorder %s24, 0
      %p87 = por %p85, %p86
      %p88 = scmp.ne.s32.totalorder %s76, %s77
      %p89 = scmp.eq.s32.totalorder %s25, 1
      %p90 = por %p88, %p89
      %p92 = scmp.ne.s32.totalorder %s77, %s91
      %p93 = scmp.eq.s32.totalorder %s25, 0
      %p94 = por %p92, %p93
      %s96 = sadd.s32 %s95, 1
      %p99 = scmp.eq.s32.totalorder %s19, 1
      %p100 = scmp.ne.s32.totalorder %s95, %s97
      %p101 = scmp.eq.s32.totalorder %s19, 0
      %p102 = por %p100, %p101
      %p103 = scmp.ne.s32.totalorder %s95, %s97
      %p104 = scmp.eq.s32.totalorder %s24, 1
      %p105 = por %p103, %p104
      %p106 = scmp.ne.s32.totalorder %s97, %s98
      %p107 = scmp.eq.s32.totalorder %s24, 0
      %p108 = por %p106, %p107
      %p109 = scmp.ne.s32.totalorder %s97, %s98
      %p110 = scmp.eq.s32.totalorder %s25, 1
      %p111 = por %p109, %p110
      %p113 = scmp.ne.s32.totalorder %s98, %s112
      %p114 = scmp.eq.s32.totalorder %s25, 0
      %p115 = por %p113, %p114
      %s117 = sadd.s32 %s116, 1
      %p120 = scmp.eq.s32.totalorder %s19, 1
      %p121 = scmp.ne.s32.totalorder %s116, %s118
      %p122 = scmp.eq.s32.totalorder %s19, 0
      %p123 = por %p121, %p122
      %p124 = scmp.ne.s32.totalorder %s116, %s118
      %p125 = scmp.eq.s32.totalorder %s24, 1
      %p126 = por %p124, %p125
      %p127 = scmp.ne.s32.totalorder %s118, %s119
      %p128 = scmp.eq.s32.totalorder %s24, 0
      %p129 = por %p127, %p128
      %p130 = scmp.ne.s32.totalorder %s118, %s119
      %p131 = scmp.eq.s32.totalorder %s25, 1
      %p132 = por %p130, %p131
      %p134 = scmp.ne.s32.totalorder %s119, %s133
      %p135 = scmp.eq.s32.totalorder %s25, 0
      %p136 = por %p134, %p135
      %s137 = ssub.s32 %s19, %s26
      %p138 = scmp.eq.s32.totalorder %s137, 0
      %s140 = sadd.s32 %s139, 1
      %s141 = scalar_select %p138, %s139, %s140
      %p144 = pneg %p138
      %p145 = scmp.eq.s32.totalorder %s19, 1
      %p146 = por %p144, %p145
      %p147 = scmp.ne.s32.totalorder %s139, %s142
      %p148 = scmp.eq.s32.totalorder %s19, 0
      %p149 = por %p147, %p148
      %p150 = scmp.ne.s32.totalorder %s139, %s142
      %p151 = scmp.eq.s32.totalorder %s24, 1
      %p152 = por %p150, %p151
      %p153 = scmp.ne.s32.totalorder %s142, %s143
      %p154 = scmp.eq.s32.totalorder %s24, 0
      %p155 = por %p153, %p154
      %p156 = scmp.ne.s32.totalorder %s142, %s143
      %p157 = scmp.eq.s32.totalorder %s25, 1
      %p158 = por %p156, %p157
      %p160 = scmp.ne.s32.totalorder %s143, %s159
      %p161 = scmp.eq.s32.totalorder %s25, 0
      %p162 = por %p160, %p161
      %p163 = scmp.le.s32.totalorder 1, %s19
      %p164 = scmp.lt.s32.totalorder %s19, 3
      %p165 = pnand %p163, %p164
      %p166 = pneg %p165
      // Predicated region
      $region9: #{tpu_custom_call.1} parent=5 // pred_check
        _
      $region10: #{tpu_custom_call.1} parent=5 // pred_check_branch
        %168 = sbr.rel (%p165) target = $region12
      $region11: #{tpu_custom_call.1} parent=5 // pred_region
        %s169 = ssub.s32 %s19, 1
        // Predicated region
        $region13: #{tpu_custom_call.1} parent=11 // pred_check
          %p170 = pneg %p66
        $region14: #{tpu_custom_call.1} parent=11 // pred_check_branch
          %172 = sbr.rel (%p170) target = $region16
        $region15: #{tpu_custom_call.1} parent=11 // pred_region
          _
        $region16: #{tpu_custom_call.1} parent=11 // pred_fallthru
          _
        // Predicated region
        $region17: #{tpu_custom_call.1} parent=11 // pred_check
          %p173 = pneg %p87
        $region18: #{tpu_custom_call.1} parent=11 // pred_check_branch
          %175 = sbr.rel (%p173) target = $region20
        $region19: #{tpu_custom_call.1} parent=11 // pred_region
          _
        $region20: #{tpu_custom_call.1} parent=11 // pred_fallthru
          _
        // Predicated region
        $region21: #{tpu_custom_call.1} parent=11 // pred_check
          %p176 = pneg %p108
        $region22: #{tpu_custom_call.1} parent=11 // pred_check_branch
          %178 = sbr.rel (%p176) target = $region24
        $region23: #{tpu_custom_call.1} parent=11 // pred_region
          %180 = vsyncadd [#allocation8], 0
          %s182 = sshll.u32 %s3, 4
          %s183 = int_to_ptr.hbm [resolvable:$true] %s182
          %s184 = sshll.u32 [#allocation7], 4
          %s185 = int_to_ptr.vmem [resolvable:$true] %s184
          %187 = dma.hbm_to_vmem [thread:$0]  %s183, 256, %s185, [#allocation8]
        $region24: #{tpu_custom_call.1} parent=11 // pred_fallthru
          _
        // Predicated region
        $region25: #{tpu_custom_call.1} parent=11 // pred_check
          %p188 = pneg %p129
        $region26: #{tpu_custom_call.1} parent=11 // pred_check_branch
          %190 = sbr.rel (%p188) target = $region28
        $region27: #{tpu_custom_call.1} parent=11 // pred_region
          %192 = vsyncadd [#allocation6], 0
          %s194 = sshll.u32 %s4, 4
          %s195 = int_to_ptr.vmem [resolvable:$true] %s194
          %197 = dma.vmem_to_smem %s195, 16, [#allocation9], [#allocation6]
        $region28: #{tpu_custom_call.1} parent=11 // pred_fallthru
          _
      $region12: #{tpu_custom_call.1} parent=5 // pred_fallthru
        _
      %p198 = scmp.lt.s32.totalorder %s19, 2
      // Predicated region
      $region29: #{tpu_custom_call.1} parent=5 // pred_check
        %p199 = pneg %p198
      $region30: #{tpu_custom_call.1} parent=5 // pred_check_branch
        %201 = sbr.rel (%p199) target = $region32
      $region31: #{tpu_custom_call.1} parent=5 // pred_region
        // Predicated region
        $region33: #{tpu_custom_call.1} parent=31 // pred_check
          %p202 = pneg %p39
        $region34: #{tpu_custom_call.1} parent=31 // pred_check_branch
          %204 = sbr.rel (%p202) target = $region36
        $region35: #{tpu_custom_call.1} parent=31 // pred_region
          %s205 = sand.u32 %s29, 1
          %s206 = scalar_lea.sflag [#allocation4], %s205
          %s207 = sand.u32 %s29, 1
          %s208 = smul.addr %s207, 8
          %s209 = scalar_lea.vmem [#allocation3], %s208
          %211 = vsyncadd %s206, 0
          %s212 = smul.addr %s19, 2
          %s213 = smul.addr %s212, 4
          %s214 = scalar_lea.hbm %s0, %s213
          %s216 = sshll.u32 %s214, 4
          %s217 = int_to_ptr.hbm [resolvable:$true] %s216
          %s218 = sshll.u32 %s209, 4
          %s219 = int_to_ptr.vmem [resolvable:$true] %s218
          %221 = dma.hbm_to_vmem [thread:$0]  %s217, 128, %s219, %s206
        $region36: #{tpu_custom_call.1} parent=31 // pred_fallthru
          _
      $region32: #{tpu_custom_call.1} parent=5 // pred_fallthru
        _
      %p222 = scmp.le.s32.totalorder 1, %s19
      %p223 = scmp.lt.s32.totalorder %s19, 3
      %p224 = pnand %p222, %p223
      %p225 = pneg %p224
      // Predicated region
      $region37: #{tpu_custom_call.1} parent=5 // pred_check
        _
      $region38: #{tpu_custom_call.1} parent=5 // pred_check_branch
        %227 = sbr.rel (%p224) target = $region40
      $region39: #{tpu_custom_call.1} parent=5 // pred_region
        %s228 = ssub.s32 %s19, 1
        %s229 = sand.u32 %s32, 1
        %s230 = scalar_lea.sflag [#allocation4], %s229
        %s231 = sand.u32 %s32, 1
        %s232 = smul.addr %s231, 8
        %s233 = scalar_lea.vmem [#allocation3], %s232
        // Predicated region
        $region41: #{tpu_custom_call.1} parent=39 // pred_check
          %p234 = pneg %p45
        $region42: #{tpu_custom_call.1} parent=39 // pred_check_branch
          %236 = sbr.rel (%p234) target = $region44
        $region43: #{tpu_custom_call.1} parent=39 // pred_region
          %238 = dma.done %s230, 128
        $region44: #{tpu_custom_call.1} parent=39 // pred_fallthru
          _
        // Predicated region
        $region45: #{tpu_custom_call.1} parent=39 // pred_check
          %p239 = pneg %p108
        $region46: #{tpu_custom_call.1} parent=39 // pred_check_branch
          %241 = sbr.rel (%p239) target = $region48
        $region47: #{tpu_custom_call.1} parent=39 // pred_region
          %243 = dma.done [#allocation8], 256
        $region48: #{tpu_custom_call.1} parent=39 // pred_fallthru
          _
        // Predicated region
        $region49: #{tpu_custom_call.1} parent=39 // pred_check
          %p244 = pneg %p129
        $region50: #{tpu_custom_call.1} parent=39 // pred_check_branch
          %246 = sbr.rel (%p244) target = $region52
        $region51: #{tpu_custom_call.1} parent=39 // pred_region
          %248 = dma.done [#allocation6], 16
        $region52: #{tpu_custom_call.1} parent=39 // pred_fallthru
          _
        %249 = sfence
        %s250 = sand.u32 %s32, 1
        %s251 = scalar_lea.sflag [#allocation4], %s250
        %s252 = sand.u32 %s32, 1
        %s253 = smul.addr %s252, 8
        %s254 = scalar_lea.vmem [#allocation3], %s253
        %p255 = pneg %p45
        %p256 = pneg %p42
        %p257 = pneg %p66
        %p258 = pneg %p63
        %p259 = pneg %p87
        %p260 = pneg %p84
        %p261 = pneg %p108
        %p262 = pneg %p105
        %p263 = pneg %p129
        %p264 = pneg %p126
        %p265 = pneg %p155
        %p266 = pneg %p152
        %s267 = sand.u32 %s142, 1
        %s268 = scalar_lea.sflag [#allocation5], %s267
        %s269 = sand.u32 %s142, 1
        %s270 = smul.addr %s269, 8
        %s271 = scalar_lea.vmem [#allocation10], %s270
        %v272 = vld [vmem:[%s233] sm:$0xff]
        %274 = vst [vmem:[#allocation1] ss:$2 sm:$0xff] %v272
        %v275 = vld.sshfl [vmem:[#allocation1] sm:$0xff pattern:$0x75316420]
        %v276 = vld.sshfl [vmem:[#allocation1 + $0x8] sm:$0xff pattern:$0x75316420]
        %vm279 = vcmask 1043456
        %v280 = vsel %vm279, %v275, 0.0
        %v281 = vsel %vm279, %v276, 0.0
        %v282 = vadd.f32 %v280, %v281
        %283 = vadd.xlane.f32.xlu0 %v282
        %v284 = vpop.xlane.xlu0 %283
        %v285 = vrcp.pop 256.0
        %v286 = vmul.f32 256.0, %v285
        %v287 = vsub.f32 1.0, %v286
        %v288 = vmul.f32 %v285, %v287
        %v289 = vadd.f32 %v285, %v288
        %vm290 = vweird.f32 %v285
        %v291 = vsel %vm290, %v285, %v289
        %v292 = vmul.f32 %v284, %v291
        %293 = vst [vmem:[#allocation1] ss:$2 sm:$0xff] %v272
        %v294 = vld.sshfl [vmem:[#allocation1] sm:$0xff pattern:$0x75316420]
        %v295 = vld.sshfl [vmem:[#allocation1 + $0x8] sm:$0xff pattern:$0x75316420]
        %v298 = vsel %vm279, %v294, -inf
        %v299 = vsel %vm279, %v295, -inf
        %v300 = vmax.f32 %v298, %v299
        %301 = vmax.xlane.f32.xlu0 %v300
        %v302 = vpop.xlane.xlu0 %301
        %vm303 = vcmask 7168
        %v304 = vsel %vm303, %v292, %v302
        %v305 = vld [vmem:[%s1] sm:$0xff]
        %vm306 = vcmask 31744
        %v308 = vsel %vm306, %v305, 0
        %v311 = vsel %vm279, %v304, 0
        %313 = vmatpush.msra.mxu0 0.0
        %314 = vmatpush.msra.mxu0 0.0
        %315 = vmatpush.msra.mxu0 0.0
        %316 = vmatpush.msra.mxu0 0.0
        %317 = vmatpush.msra.mxu0 0.0
        %318 = vmatpush.msra.mxu0 0.0
        %319 = vmatpush.msra.mxu0 0.0
        %320 = vmatpush.msra.mxu0 0.0
        %321 = vmatpush.msra.mxu0 0.0
        %322 = vmatpush.msra.mxu0 0.0
        %323 = vmatpush.msra.mxu0 0.0
        %324 = vmatpush.msra.mxu0 0.0
        %325 = vmatpush.msra.mxu0 0.0
        %326 = vmatpush.msra.mxu0 0.0
        %327 = vmatpush.msra.mxu0 0.0
        %328 = vmatpush.msra.mxu0 %v311
        %329 = vmatmul.f32.gmra.mxu0 %v308
        %v330 = vpop.f32.mrf.mxu0
        %v331 = vadd.f32 0.0, %v330
        %332 = vdwg.mxu0
        %v333 = vmax.f32 %v331, 0.0
        %v334 = vld [vmem:[%s2] sm:$0xf]
        %vm335 = vcmask 64512
        %v337 = vsel %vm335, %v334, 0
        %339 = vmatpush.msra.mxu0 0.0
        %340 = vmatpush.msra.mxu0 0.0
        %341 = vmatpush.msra.mxu0 0.0
        %342 = vmatpush.msra.mxu0 0.0
        %343 = vmatpush.msra.mxu0 0.0
        %344 = vmatpush.msra.mxu0 0.0
        %345 = vmatpush.msra.mxu0 0.0
        %346 = vmatpush.msra.mxu0 0.0
        %347 = vmatpush.msra.mxu0 0.0
        %348 = vmatpush.msra.mxu0 0.0
        %349 = vmatpush.msra.mxu0 0.0
        %350 = vmatpush.msra.mxu0 0.0
        %351 = vmatpush.msra.mxu0 0.0
        %352 = vmatpush.msra.mxu0 0.0
        %353 = vmatpush.msra.mxu0 0.0
        %354 = vmatpush.msra.mxu0 %v333
        %355 = vmatmul.f32.gmra.mxu0 %v337
        %v356 = vpop.f32.mrf.mxu0
        %v357 = vadd.f32 0.0, %v356
        %358 = vdwg.mxu0
        %360 = vrot.lane.b32.xlu0 %v357, 127
        %v361 = vpop.permute.xlu0 %360
        %v363 = vadd.f32 %v357, %v361
        %v364 = vxor.u32 %v363, 2147483648
        %v365 = vmul.f32 %v364, 1.442695
        %v366 = vpow.pop %v365
        %v367 = vadd.f32 %v366, 1.0
        %v368 = vrcp.pop %v367
        %v369 = vmul.f32 %v367, %v368
        %v370 = vsub.f32 1.0, %v369
        %v371 = vmul.f32 %v368, %v370
        %v372 = vadd.f32 %v368, %v371
        %vm373 = vweird.f32 %v367
        %vm374 = vweird.f32 %v368
        %vm375 = vmor %vm373, %vm374
        %v376 = vsel %vm375, %v368, %v372
        %v377 = vand.u32 2147483647, %v367
        %vm378 = vcmp.eq.f32.partialorder %v377, 8.507059e+37
        %v379 = vand.u32 %v367, 2147483648
        %v380 = vor.u32 1.1754944e-38, %v379
        %v381 = vsel %vm378, %v380, %v376
        %v382 = vmul.f32 1.0, %v381
        %384 = vset.pattern.permute.xlu0 0
        %385 = vperm.xlu0 %384, %v382
        %v386 = vpop.permute.xlu0 %385
        %v388 = vunpack.c.l.s4 839922192
        %v389 = vunpack.c.0.s8 %v388
        %v390 = vperm.slane %v386, %v389
        %v392 = vmul.f32 %v272, %v390
        %394 = vst [vmem:[#allocation1] ss:$2 sm:$0xff] %v392
        %v395 = vld.sshfl [vmem:[#allocation1] sm:$0xff pattern:$0x75316420]
        %v396 = vld.sshfl [vmem:[#allocation1 + $0x8] sm:$0xff pattern:$0x75316420]
        %v399 = vsel %vm279, %v395, 0.0
        %v400 = vrot.slane %v399, 4
        %v401 = vadd.f32 %v399, %v400
        %v402 = vrot.slane %v401, 2
        %v403 = vadd.f32 %v401, %v402
        %v404 = vrot.slane %v403, 1
        %v405 = vadd.f32 %v403, %v404
        %v406 = vsel %vm279, %v396, 0.0
        %v407 = vrot.slane %v406, 4
        %v408 = vadd.f32 %v406, %v407
        %v409 = vrot.slane %v408, 2
        %v410 = vadd.f32 %v408, %v409
        %v411 = vrot.slane %v410, 1
        %v412 = vadd.f32 %v410, %v411
        %v413 = vrcp.pop 4.0
        %v414 = vmul.f32 4.0, %v413
        %v415 = vsub.f32 1.0, %v414
        %v416 = vmul.f32 %v413, %v415
        %v417 = vadd.f32 %v413, %v416
        %vm418 = vweird.f32 %v413
        %v419 = vsel %vm418, %v413, %v417
        %v420 = vmul.f32 %v405, %v419
        %v421 = vmul.f32 %v412, %v419
        %422 = vst [vmem:[#allocation1] ss:$2 sm:$0xff] %v392
        %v423 = vld.sshfl [vmem:[#allocation1] sm:$0xff pattern:$0x75316420]
        %v424 = vld.sshfl [vmem:[#allocation1 + $0x8] sm:$0xff pattern:$0x75316420]
        %v427 = vsel %vm279, %v423, -inf
        %v428 = vrot.slane %v427, 4
        %v429 = vmax.f32 %v427, %v428
        %v430 = vrot.slane %v429, 2
        %v431 = vmax.f32 %v429, %v430
        %v432 = vrot.slane %v431, 1
        %v433 = vmax.f32 %v431, %v432
        %v434 = vsel %vm279, %v424, -inf
        %v435 = vrot.slane %v434, 4
        %v436 = vmax.f32 %v434, %v435
        %v437 = vrot.slane %v436, 2
        %v438 = vmax.f32 %v436, %v437
        %v439 = vrot.slane %v438, 1
        %v440 = vmax.f32 %v438, %v439
        %v441 = vlaneseq
        %vm442 = vcmp.ge.s32.totalorder %v441, 0
        %vm443 = vcmp.lt.s32.totalorder %v441, 384
        %vm444 = vmand %vm442, %vm443
        %445 = vst.msk [vmem:[#allocation2] sm:$0x7] %vm444, 0.0
        %446 = vst.msk [vmem:[#allocation2 + $0x3] sm:$0x7] %vm444, 0.0
        %v449 = vrot.slane %v421, 7
        %vm450 = vcmask 1040384
        %v451 = vsel %vm450, %v420, %v449
        %452 = vrot.lane.b32.xlu0 %v451, 51
        %v453 = vpop.permute.xlu0 %452
        %v454 = vrot.slane %v453, 7
        %vm455 = vcmask 416768
        %v456 = vsel %vm455, %v454, %v453
        %vm458 = vcmp.ge.s32.totalorder %v441, 51
        %vm459 = vcmp.lt.s32.totalorder %v441, 307
        %vm460 = vmand %vm458, %vm459
        %461 = vst.msk [vmem:[#allocation2] sm:$0x7] %vm460, %v456
        %v464 = vrot.slane %v440, 7
        %v465 = vsel %vm450, %v433, %v464
        %466 = vrot.lane.b32.xlu0 %v465, 51
        %v467 = vpop.permute.xlu0 %466
        %v468 = vrot.slane %v467, 7
        %v469 = vsel %vm455, %v468, %v467
        %s471 = scalar_lea.vmem [#allocation2], 3
        %472 = vst.msk [vmem:[%s471] sm:$0x7] %vm460, %v469
        %v473 = vld [vmem:[#allocation7] ss:$8 sm:$0x3]
        %v474 = vld [vmem:[#allocation2] sm:$0x3]
        %v475 = vld [vmem:[%s471] sm:$0x3]
        %s476 = sld [smem:[#allocation9]]
        %s477 = sld [smem:[#allocation9 + $0x31]]
        %v478 = vstv %s476
        %v479 = vmul.f32 %v478, %v474
        %v480 = vstv %s477
        %v481 = vmul.f32 %v480, %v475
        %v482 = vadd.f32 %v479, %v481
        %v483 = vmul.f32 %v473, %v482
        %v484 = vadd.f32 %v483, 0.0
        %v485 = vld [vmem:[#allocation2] sm:$0x7]
        %v486 = vld [vmem:[%s471] sm:$0x7]
        %s487 = sld [smem:[#allocation9 + $0x7]]
        %s488 = sld [smem:[#allocation9 + $0x38]]
        %v489 = vstv %s487
        %v490 = vmul.f32 %v489, %v485
        %v491 = vstv %s488
        %v492 = vmul.f32 %v491, %v486
        %v493 = vadd.f32 %v490, %v492
        %495 = vrot.lane.b32.xlu0 %v493, 112
        %v496 = vpop.permute.xlu0 %495
        %v497 = vrot.slane %v496, 1
        %vm498 = vcmask 916480
        %v499 = vsel %vm498, %v496, %v497
        %v501 = vmul.f32 %v473, %v499
        %v502 = vadd.f32 %v501, 0.0
        %s503 = sld [smem:[#allocation9 + $0xe]]
        %s504 = sld [smem:[#allocation9 + $0x3f]]
        %v505 = vstv %s503
        %v506 = vmul.f32 %v505, %v485
        %v507 = vstv %s504
        %v508 = vmul.f32 %v507, %v486
        %v509 = vadd.f32 %v506, %v508
        %511 = vrot.lane.b32.xlu0 %v509, 96
        %v512 = vpop.permute.xlu0 %511
        %v513 = vrot.slane %v512, 1
        %vm514 = vcmask 785408
        %v515 = vsel %vm514, %v512, %v513
        %v517 = vmul.f32 %v473, %v515
        %v518 = vadd.f32 %v484, %v517
        %s519 = sld [smem:[#allocation9 + $0x15]]
        %s520 = sld [smem:[#allocation9 + $0x46]]
        %v521 = vstv %s519
        %v522 = vmul.f32 %v521, %v485
        %v523 = vstv %s520
        %v524 = vmul.f32 %v523, %v486
        %v525 = vadd.f32 %v522, %v524
        %527 = vrot.lane.b32.xlu0 %v525, 80
        %v528 = vpop.permute.xlu0 %527
        %v529 = vrot.slane %v528, 1
        %vm530 = vcmask 654336
        %v531 = vsel %vm530, %v528, %v529
        %v533 = vmul.f32 %v473, %v531
        %v534 = vadd.f32 %v502, %v533
        %s535 = sld [smem:[#allocation9 + $0x1c]]
        %s536 = sld [smem:[#allocation9 + $0x4d]]
        %v537 = vstv %s535
        %v538 = vmul.f32 %v537, %v485
        %v539 = vstv %s536
        %v540 = vmul.f32 %v539, %v486
        %v541 = vadd.f32 %v538, %v540
        %543 = vrot.lane.b32.xlu0 %v541, 64
        %v544 = vpop.permute.xlu0 %543
        %v545 = vrot.slane %v544, 1
        %vm546 = vcmask 523264
        %v547 = vsel %vm546, %v544, %v545
        %v549 = vmul.f32 %v473, %v547
        %v550 = vadd.f32 %v518, %v549
        %s551 = sld [smem:[#allocation9 + $0x23]]
        %s552 = sld [smem:[#allocation9 + $0x54]]
        %v553 = vstv %s551
        %v554 = vmul.f32 %v553, %v485
        %v555 = vstv %s552
        %v556 = vmul.f32 %v555, %v486
        %v557 = vadd.f32 %v554, %v556
        %559 = vrot.lane.b32.xlu0 %v557, 48
        %v560 = vpop.permute.xlu0 %559
        %v561 = vrot.slane %v560, 1
        %vm562 = vcmask 392192
        %v563 = vsel %vm562, %v560, %v561
        %v565 = vmul.f32 %v473, %v563
        %v566 = vadd.f32 %v534, %v565
        %s567 = sld [smem:[#allocation9 + $0x2a]]
        %s568 = sld [smem:[#allocation9 + $0x5b]]
        %v569 = vstv %s567
        %v570 = vmul.f32 %v569, %v485
        %v571 = vstv %s568
        %v572 = vmul.f32 %v571, %v486
        %v573 = vadd.f32 %v570, %v572
        %575 = vrot.lane.b32.xlu0 %v573, 32
        %v576 = vpop.permute.xlu0 %575
        %v577 = vrot.slane %v576, 1
        %vm578 = vcmask 261120
        %v579 = vsel %vm578, %v576, %v577
        %v581 = vmul.f32 %v473, %v579
        %v582 = vadd.f32 %v550, %v581
        %s583 = scalar_lea.vmem [#allocation7], 1
        %v584 = vld [vmem:[%s583] ss:$8 sm:$0x3]
        %s585 = sld [smem:[#allocation9 + $0x1]]
        %s586 = sld [smem:[#allocation9 + $0x32]]
        %v587 = vstv %s585
        %v588 = vmul.f32 %v587, %v485
        %v589 = vstv %s586
        %v590 = vmul.f32 %v589, %v486
        %v591 = vadd.f32 %v588, %v590
        %593 = vrot.lane.b32.xlu0 %v591, 127
        %v594 = vpop.permute.xlu0 %593
        %v595 = vrot.slane %v594, 1
        %vm596 = vcmask 1039360
        %v597 = vsel %vm596, %v594, %v595
        %v599 = vmul.f32 %v584, %v597
        %v600 = vadd.f32 %v599, 0.0
        %s601 = sld [smem:[#allocation9 + $0x8]]
        %s602 = sld [smem:[#allocation9 + $0x39]]
        %v603 = vstv %s601
        %v604 = vmul.f32 %v603, %v485
        %v605 = vstv %s602
        %v606 = vmul.f32 %v605, %v486
        %v607 = vadd.f32 %v604, %v606
        %609 = vrot.lane.b32.xlu0 %v607, 111
        %v610 = vpop.permute.xlu0 %609
        %v611 = vrot.slane %v610, 1
        %vm612 = vcmask 908288
        %v613 = vsel %vm612, %v610, %v611
        %v615 = vmul.f32 %v584, %v613
        %v616 = vadd.f32 %v615, 0.0
        %s617 = sld [smem:[#allocation9 + $0xf]]
        %s618 = sld [smem:[#allocation9 + $0x40]]
        %v619 = vstv %s617
        %v620 = vmul.f32 %v619, %v485
        %v621 = vstv %s618
        %v622 = vmul.f32 %v621, %v486
        %v623 = vadd.f32 %v620, %v622
        %625 = vrot.lane.b32.xlu0 %v623, 95
        %v626 = vpop.permute.xlu0 %625
        %v627 = vrot.slane %v626, 1
        %vm628 = vcmask 777216
        %v629 = vsel %vm628, %v626, %v627
        %v631 = vmul.f32 %v584, %v629
        %v632 = vadd.f32 %v600, %v631
        %s633 = sld [smem:[#allocation9 + $0x16]]
        %s634 = sld [smem:[#allocation9 + $0x47]]
        %v635 = vstv %s633
        %v636 = vmul.f32 %v635, %v485
        %v637 = vstv %s634
        %v638 = vmul.f32 %v637, %v486
        %v639 = vadd.f32 %v636, %v638
        %641 = vrot.lane.b32.xlu0 %v639, 79
        %v642 = vpop.permute.xlu0 %641
        %v643 = vrot.slane %v642, 1
        %vm644 = vcmask 646144
        %v645 = vsel %vm644, %v642, %v643
        %v647 = vmul.f32 %v584, %v645
        %v648 = vadd.f32 %v616, %v647
        %s649 = sld [smem:[#allocation9 + $0x1d]]
        %s650 = sld [smem:[#allocation9 + $0x4e]]
        %v651 = vstv %s649
        %v652 = vmul.f32 %v651, %v485
        %v653 = vstv %s650
        %v654 = vmul.f32 %v653, %v486
        %v655 = vadd.f32 %v652, %v654
        %657 = vrot.lane.b32.xlu0 %v655, 63
        %v658 = vpop.permute.xlu0 %657
        %v659 = vrot.slane %v658, 1
        %vm660 = vcmask 515072
        %v661 = vsel %vm660, %v658, %v659
        %v663 = vmul.f32 %v584, %v661
        %v664 = vadd.f32 %v632, %v663
        %s665 = sld [smem:[#allocation9 + $0x24]]
        %s666 = sld [smem:[#allocation9 + $0x55]]
        %v667 = vstv %s665
        %v668 = vmul.f32 %v667, %v485
        %v669 = vstv %s666
        %v670 = vmul.f32 %v669, %v486
        %v671 = vadd.f32 %v668, %v670
        %673 = vrot.lane.b32.xlu0 %v671, 47
        %v674 = vpop.permute.xlu0 %673
        %v675 = vrot.slane %v674, 1
        %vm676 = vcmask 384000
        %v677 = vsel %vm676, %v674, %v675
        %v679 = vmul.f32 %v584, %v677
        %v680 = vadd.f32 %v648, %v679
        %s681 = sld [smem:[#allocation9 + $0x2b]]
        %s682 = sld [smem:[#allocation9 + $0x5c]]
        %v683 = vstv %s681
        %v684 = vmul.f32 %v683, %v485
        %v685 = vstv %s682
        %v686 = vmul.f32 %v685, %v486
        %v687 = vadd.f32 %v684, %v686
        %689 = vrot.lane.b32.xlu0 %v687, 31
        %v690 = vpop.permute.xlu0 %689
        %v691 = vrot.slane %v690, 1
        %vm692 = vcmask 252928
        %v693 = vsel %vm692, %v690, %v691
        %v695 = vmul.f32 %v584, %v693
        %v696 = vadd.f32 %v664, %v695
        %s697 = scalar_lea.vmem [#allocation7], 2
        %v698 = vld [vmem:[%s697] ss:$8 sm:$0x3]
        %s699 = sld [smem:[#allocation9 + $0x2]]
        %s700 = sld [smem:[#allocation9 + $0x33]]
        %v701 = vstv %s699
        %v702 = vmul.f32 %v701, %v485
        %v703 = vstv %s700
        %v704 = vmul.f32 %v703, %v486
        %v705 = vadd.f32 %v702, %v704
        %707 = vrot.lane.b32.xlu0 %v705, 126
        %v708 = vpop.permute.xlu0 %707
        %v709 = vrot.slane %v708, 1
        %vm710 = vcmask 1031168
        %v711 = vsel %vm710, %v708, %v709
        %v713 = vmul.f32 %v698, %v711
        %v714 = vadd.f32 %v582, %v713
        %s715 = sld [smem:[#allocation9 + $0x9]]
        %s716 = sld [smem:[#allocation9 + $0x3a]]
        %v717 = vstv %s715
        %v718 = vmul.f32 %v717, %v485
        %v719 = vstv %s716
        %v720 = vmul.f32 %v719, %v486
        %v721 = vadd.f32 %v718, %v720
        %723 = vrot.lane.b32.xlu0 %v721, 110
        %v724 = vpop.permute.xlu0 %723
        %v725 = vrot.slane %v724, 1
        %vm726 = vcmask 900096
        %v727 = vsel %vm726, %v724, %v725
        %v729 = vmul.f32 %v698, %v727
        %v730 = vadd.f32 %v566, %v729
        %s731 = sld [smem:[#allocation9 + $0x10]]
        %s732 = sld [smem:[#allocation9 + $0x41]]
        %v733 = vstv %s731
        %v734 = vmul.f32 %v733, %v485
        %v735 = vstv %s732
        %v736 = vmul.f32 %v735, %v486
        %v737 = vadd.f32 %v734, %v736
        %739 = vrot.lane.b32.xlu0 %v737, 94
        %v740 = vpop.permute.xlu0 %739
        %v741 = vrot.slane %v740, 1
        %vm742 = vcmask 769024
        %v743 = vsel %vm742, %v740, %v741
        %v745 = vmul.f32 %v698, %v743
        %v746 = vadd.f32 %v714, %v745
        %s747 = sld [smem:[#allocation9 + $0x17]]
        %s748 = sld [smem:[#allocation9 + $0x48]]
        %v749 = vstv %s747
        %v750 = vmul.f32 %v749, %v485
        %v751 = vstv %s748
        %v752 = vmul.f32 %v751, %v486
        %v753 = vadd.f32 %v750, %v752
        %755 = vrot.lane.b32.xlu0 %v753, 78
        %v756 = vpop.permute.xlu0 %755
        %v757 = vrot.slane %v756, 1
        %vm758 = vcmask 637952
        %v759 = vsel %vm758, %v756, %v757
        %v761 = vmul.f32 %v698, %v759
        %v762 = vadd.f32 %v730, %v761
        %s763 = sld [smem:[#allocation9 + $0x1e]]
        %s764 = sld [smem:[#allocation9 + $0x4f]]
        %v765 = vstv %s763
        %v766 = vmul.f32 %v765, %v485
        %v767 = vstv %s764
        %v768 = vmul.f32 %v767, %v486
        %v769 = vadd.f32 %v766, %v768
        %771 = vrot.lane.b32.xlu0 %v769, 62
        %v772 = vpop.permute.xlu0 %771
        %v773 = vrot.slane %v772, 1
        %vm774 = vcmask 506880
        %v775 = vsel %vm774, %v772, %v773
        %v777 = vmul.f32 %v698, %v775
        %v778 = vadd.f32 %v746, %v777
        %s779 = sld [smem:[#allocation9 + $0x25]]
        %s780 = sld [smem:[#allocation9 + $0x56]]
        %v781 = vstv %s779
        %v782 = vmul.f32 %v781, %v485
        %v783 = vstv %s780
        %v784 = vmul.f32 %v783, %v486
        %v785 = vadd.f32 %v782, %v784
        %787 = vrot.lane.b32.xlu0 %v785, 46
        %v788 = vpop.permute.xlu0 %787
        %v789 = vrot.slane %v788, 1
        %vm790 = vcmask 375808
        %v791 = vsel %vm790, %v788, %v789
        %v793 = vmul.f32 %v698, %v791
        %v794 = vadd.f32 %v762, %v793
        %s795 = sld [smem:[#allocation9 + $0x2c]]
        %s796 = sld [smem:[#allocation9 + $0x5d]]
        %v797 = vstv %s795
        %v798 = vmul.f32 %v797, %v485
        %v799 = vstv %s796
        %v800 = vmul.f32 %v799, %v486
        %v801 = vadd.f32 %v798, %v800
        %803 = vrot.lane.b32.xlu0 %v801, 30
        %v804 = vpop.permute.xlu0 %803
        %v805 = vrot.slane %v804, 1
        %vm806 = vcmask 244736
        %v807 = vsel %vm806, %v804, %v805
        %v809 = vmul.f32 %v698, %v807
        %v810 = vadd.f32 %v778, %v809
        %s811 = scalar_lea.vmem [#allocation7], 3
        %v812 = vld [vmem:[%s811] ss:$8 sm:$0x3]
        %s813 = sld [smem:[#allocation9 + $0x3]]
        %s814 = sld [smem:[#allocation9 + $0x34]]
        %v815 = vstv %s813
        %v816 = vmul.f32 %v815, %v485
        %v817 = vstv %s814
        %v818 = vmul.f32 %v817, %v486
        %v819 = vadd.f32 %v816, %v818
        %821 = vrot.lane.b32.xlu0 %v819, 125
        %v822 = vpop.permute.xlu0 %821
        %v823 = vrot.slane %v822, 1
        %vm824 = vcmask 1022976
        %v825 = vsel %vm824, %v822, %v823
        %v827 = vmul.f32 %v812, %v825
        %v828 = vadd.f32 %v696, %v827
        %s829 = sld [smem:[#allocation9 + $0xa]]
        %s830 = sld [smem:[#allocation9 + $0x3b]]
        %v831 = vstv %s829
        %v832 = vmul.f32 %v831, %v485
        %v833 = vstv %s830
        %v834 = vmul.f32 %v833, %v486
        %v835 = vadd.f32 %v832, %v834
        %837 = vrot.lane.b32.xlu0 %v835, 109
        %v838 = vpop.permute.xlu0 %837
        %v839 = vrot.slane %v838, 1
        %vm840 = vcmask 891904
        %v841 = vsel %vm840, %v838, %v839
        %v843 = vmul.f32 %v812, %v841
        %v844 = vadd.f32 %v680, %v843
        %s845 = sld [smem:[#allocation9 + $0x11]]
        %s846 = sld [smem:[#allocation9 + $0x42]]
        %v847 = vstv %s845
        %v848 = vmul.f32 %v847, %v485
        %v849 = vstv %s846
        %v850 = vmul.f32 %v849, %v486
        %v851 = vadd.f32 %v848, %v850
        %853 = vrot.lane.b32.xlu0 %v851, 93
        %v854 = vpop.permute.xlu0 %853
        %v855 = vrot.slane %v854, 1
        %vm856 = vcmask 760832
        %v857 = vsel %vm856, %v854, %v855
        %v859 = vmul.f32 %v812, %v857
        %v860 = vadd.f32 %v828, %v859
        %s861 = sld [smem:[#allocation9 + $0x18]]
        %s862 = sld [smem:[#allocation9 + $0x49]]
        %v863 = vstv %s861
        %v864 = vmul.f32 %v863, %v485
        %v865 = vstv %s862
        %v866 = vmul.f32 %v865, %v486
        %v867 = vadd.f32 %v864, %v866
        %869 = vrot.lane.b32.xlu0 %v867, 77
        %v870 = vpop.permute.xlu0 %869
        %v871 = vrot.slane %v870, 1
        %vm872 = vcmask 629760
        %v873 = vsel %vm872, %v870, %v871
        %v875 = vmul.f32 %v812, %v873
        %v876 = vadd.f32 %v844, %v875
        %s877 = sld [smem:[#allocation9 + $0x1f]]
        %s878 = sld [smem:[#allocation9 + $0x50]]
        %v879 = vstv %s877
        %v880 = vmul.f32 %v879, %v485
        %v881 = vstv %s878
        %v882 = vmul.f32 %v881, %v486
        %v883 = vadd.f32 %v880, %v882
        %885 = vrot.lane.b32.xlu0 %v883, 61
        %v886 = vpop.permute.xlu0 %885
        %v887 = vrot.slane %v886, 1
        %vm888 = vcmask 498688
        %v889 = vsel %vm888, %v886, %v887
        %v891 = vmul.f32 %v812, %v889
        %v892 = vadd.f32 %v860, %v891
        %s893 = sld [smem:[#allocation9 + $0x26]]
        %s894 = sld [smem:[#allocation9 + $0x57]]
        %v895 = vstv %s893
        %v896 = vmul.f32 %v895, %v485
        %v897 = vstv %s894
        %v898 = vmul.f32 %v897, %v486
        %v899 = vadd.f32 %v896, %v898
        %901 = vrot.lane.b32.xlu0 %v899, 45
        %v902 = vpop.permute.xlu0 %901
        %v903 = vrot.slane %v902, 1
        %vm904 = vcmask 367616
        %v905 = vsel %vm904, %v902, %v903
        %v907 = vmul.f32 %v812, %v905
        %v908 = vadd.f32 %v876, %v907
        %s909 = sld [smem:[#allocation9 + $0x2d]]
        %s910 = sld [smem:[#allocation9 + $0x5e]]
        %v911 = vstv %s909
        %v912 = vmul.f32 %v911, %v485
        %v913 = vstv %s910
        %v914 = vmul.f32 %v913, %v486
        %v915 = vadd.f32 %v912, %v914
        %917 = vrot.lane.b32.xlu0 %v915, 29
        %v918 = vpop.permute.xlu0 %917
        %v919 = vrot.slane %v918, 1
        %vm920 = vcmask 236544
        %v921 = vsel %vm920, %v918, %v919
        %v923 = vmul.f32 %v812, %v921
        %v924 = vadd.f32 %v892, %v923
        %s925 = scalar_lea.vmem [#allocation7], 4
        %v926 = vld [vmem:[%s925] ss:$8 sm:$0x3]
        %s927 = sld [smem:[#allocation9 + $0x4]]
        %s928 = sld [smem:[#allocation9 + $0x35]]
        %v929 = vstv %s927
        %v930 = vmul.f32 %v929, %v485
        %v931 = vstv %s928
        %v932 = vmul.f32 %v931, %v486
        %v933 = vadd.f32 %v930, %v932
        %935 = vrot.lane.b32.xlu0 %v933, 124
        %v936 = vpop.permute.xlu0 %935
        %v937 = vrot.slane %v936, 1
        %vm938 = vcmask 1014784
        %v939 = vsel %vm938, %v936, %v937
        %v941 = vmul.f32 %v926, %v939
        %v942 = vadd.f32 %v810, %v941
        %s943 = sld [smem:[#allocation9 + $0xb]]
        %s944 = sld [smem:[#allocation9 + $0x3c]]
        %v945 = vstv %s943
        %v946 = vmul.f32 %v945, %v485
        %v947 = vstv %s944
        %v948 = vmul.f32 %v947, %v486
        %v949 = vadd.f32 %v946, %v948
        %951 = vrot.lane.b32.xlu0 %v949, 108
        %v952 = vpop.permute.xlu0 %951
        %v953 = vrot.slane %v952, 1
        %vm954 = vcmask 883712
        %v955 = vsel %vm954, %v952, %v953
        %v957 = vmul.f32 %v926, %v955
        %v958 = vadd.f32 %v794, %v957
        %s959 = sld [smem:[#allocation9 + $0x12]]
        %s960 = sld [smem:[#allocation9 + $0x43]]
        %v961 = vstv %s959
        %v962 = vmul.f32 %v961, %v485
        %v963 = vstv %s960
        %v964 = vmul.f32 %v963, %v486
        %v965 = vadd.f32 %v962, %v964
        %967 = vrot.lane.b32.xlu0 %v965, 92
        %v968 = vpop.permute.xlu0 %967
        %v969 = vrot.slane %v968, 1
        %vm970 = vcmask 752640
        %v971 = vsel %vm970, %v968, %v969
        %v973 = vmul.f32 %v926, %v971
        %v974 = vadd.f32 %v942, %v973
        %s975 = sld [smem:[#allocation9 + $0x19]]
        %s976 = sld [smem:[#allocation9 + $0x4a]]
        %v977 = vstv %s975
        %v978 = vmul.f32 %v977, %v485
        %v979 = vstv %s976
        %v980 = vmul.f32 %v979, %v486
        %v981 = vadd.f32 %v978, %v980
        %983 = vrot.lane.b32.xlu0 %v981, 76
        %v984 = vpop.permute.xlu0 %983
        %v985 = vrot.slane %v984, 1
        %vm986 = vcmask 621568
        %v987 = vsel %vm986, %v984, %v985
        %v989 = vmul.f32 %v926, %v987
        %v990 = vadd.f32 %v958, %v989
        %s991 = sld [smem:[#allocation9 + $0x20]]
        %s992 = sld [smem:[#allocation9 + $0x51]]
        %v993 = vstv %s991
        %v994 = vmul.f32 %v993, %v485
        %v995 = vstv %s992
        %v996 = vmul.f32 %v995, %v486
        %v997 = vadd.f32 %v994, %v996
        %999 = vrot.lane.b32.xlu0 %v997, 60
        %v1000 = vpop.permute.xlu0 %999
        %v1001 = vrot.slane %v1000, 1
        %vm1002 = vcmask 490496
        %v1003 = vsel %vm1002, %v1000, %v1001
        %v1005 = vmul.f32 %v926, %v1003
        %v1006 = vadd.f32 %v974, %v1005
        %s1007 = sld [smem:[#allocation9 + $0x27]]
        %s1008 = sld [smem:[#allocation9 + $0x58]]
        %v1009 = vstv %s1007
        %v1010 = vmul.f32 %v1009, %v485
        %v1011 = vstv %s1008
        %v1012 = vmul.f32 %v1011, %v486
        %v1013 = vadd.f32 %v1010, %v1012
        %1015 = vrot.lane.b32.xlu0 %v1013, 44
        %v1016 = vpop.permute.xlu0 %1015
        %v1017 = vrot.slane %v1016, 1
        %vm1018 = vcmask 359424
        %v1019 = vsel %vm1018, %v1016, %v1017
        %v1021 = vmul.f32 %v926, %v1019
        %v1022 = vadd.f32 %v990, %v1021
        %s1023 = sld [smem:[#allocation9 + $0x2e]]
        %s1024 = sld [smem:[#allocation9 + $0x5f]]
        %v1025 = vstv %s1023
        %v1026 = vmul.f32 %v1025, %v485
        %v1027 = vstv %s1024
        %v1028 = vmul.f32 %v1027, %v486
        %v1029 = vadd.f32 %v1026, %v1028
        %1031 = vrot.lane.b32.xlu0 %v1029, 28
        %v1032 = vpop.permute.xlu0 %1031
        %v1033 = vrot.slane %v1032, 1
        %vm1034 = vcmask 228352
        %v1035 = vsel %vm1034, %v1032, %v1033
        %v1037 = vmul.f32 %v926, %v1035
        %v1038 = vadd.f32 %v1006, %v1037
        %s1039 = scalar_lea.vmem [#allocation7], 5
        %v1040 = vld [vmem:[%s1039] ss:$8 sm:$0x3]
        %s1041 = sld [smem:[#allocation9 + $0x5]]
        %s1042 = sld [smem:[#allocation9 + $0x36]]
        %v1043 = vstv %s1041
        %v1044 = vmul.f32 %v1043, %v485
        %v1045 = vstv %s1042
        %v1046 = vmul.f32 %v1045, %v486
        %v1047 = vadd.f32 %v1044, %v1046
        %1049 = vrot.lane.b32.xlu0 %v1047, 123
        %v1050 = vpop.permute.xlu0 %1049
        %v1051 = vrot.slane %v1050, 1
        %vm1052 = vcmask 1006592
        %v1053 = vsel %vm1052, %v1050, %v1051
        %v1055 = vmul.f32 %v1040, %v1053
        %v1056 = vadd.f32 %v924, %v1055
        %s1057 = sld [smem:[#allocation9 + $0xc]]
        %s1058 = sld [smem:[#allocation9 + $0x3d]]
        %v1059 = vstv %s1057
        %v1060 = vmul.f32 %v1059, %v485
        %v1061 = vstv %s1058
        %v1062 = vmul.f32 %v1061, %v486
        %v1063 = vadd.f32 %v1060, %v1062
        %1065 = vrot.lane.b32.xlu0 %v1063, 107
        %v1066 = vpop.permute.xlu0 %1065
        %v1067 = vrot.slane %v1066, 1
        %vm1068 = vcmask 875520
        %v1069 = vsel %vm1068, %v1066, %v1067
        %v1071 = vmul.f32 %v1040, %v1069
        %v1072 = vadd.f32 %v908, %v1071
        %s1073 = sld [smem:[#allocation9 + $0x13]]
        %s1074 = sld [smem:[#allocation9 + $0x44]]
        %v1075 = vstv %s1073
        %v1076 = vmul.f32 %v1075, %v485
        %v1077 = vstv %s1074
        %v1078 = vmul.f32 %v1077, %v486
        %v1079 = vadd.f32 %v1076, %v1078
        %1081 = vrot.lane.b32.xlu0 %v1079, 91
        %v1082 = vpop.permute.xlu0 %1081
        %v1083 = vrot.slane %v1082, 1
        %vm1084 = vcmask 744448
        %v1085 = vsel %vm1084, %v1082, %v1083
        %v1087 = vmul.f32 %v1040, %v1085
        %v1088 = vadd.f32 %v1056, %v1087
        %s1089 = sld [smem:[#allocation9 + $0x1a]]
        %s1090 = sld [smem:[#allocation9 + $0x4b]]
        %v1091 = vstv %s1089
        %v1092 = vmul.f32 %v1091, %v485
        %v1093 = vstv %s1090
        %v1094 = vmul.f32 %v1093, %v486
        %v1095 = vadd.f32 %v1092, %v1094
        %1097 = vrot.lane.b32.xlu0 %v1095, 75
        %v1098 = vpop.permute.xlu0 %1097
        %v1099 = vrot.slane %v1098, 1
        %vm1100 = vcmask 613376
        %v1101 = vsel %vm1100, %v1098, %v1099
        %v1103 = vmul.f32 %v1040, %v1101
        %v1104 = vadd.f32 %v1072, %v1103
        %s1105 = sld [smem:[#allocation9 + $0x21]]
        %s1106 = sld [smem:[#allocation9 + $0x52]]
        %v1107 = vstv %s1105
        %v1108 = vmul.f32 %v1107, %v485
        %v1109 = vstv %s1106
        %v1110 = vmul.f32 %v1109, %v486
        %v1111 = vadd.f32 %v1108, %v1110
        %1113 = vrot.lane.b32.xlu0 %v1111, 59
        %v1114 = vpop.permute.xlu0 %1113
        %v1115 = vrot.slane %v1114, 1
        %vm1116 = vcmask 482304
        %v1117 = vsel %vm1116, %v1114, %v1115
        %v1119 = vmul.f32 %v1040, %v1117
        %v1120 = vadd.f32 %v1088, %v1119
        %s1121 = sld [smem:[#allocation9 + $0x28]]
        %s1122 = sld [smem:[#allocation9 + $0x59]]
        %v1123 = vstv %s1121
        %v1124 = vmul.f32 %v1123, %v485
        %v1125 = vstv %s1122
        %v1126 = vmul.f32 %v1125, %v486
        %v1127 = vadd.f32 %v1124, %v1126
        %1129 = vrot.lane.b32.xlu0 %v1127, 43
        %v1130 = vpop.permute.xlu0 %1129
        %v1131 = vrot.slane %v1130, 1
        %vm1132 = vcmask 351232
        %v1133 = vsel %vm1132, %v1130, %v1131
        %v1135 = vmul.f32 %v1040, %v1133
        %v1136 = vadd.f32 %v1104, %v1135
        %s1137 = sld [smem:[#allocation9 + $0x2f]]
        %s1138 = sld [smem:[#allocation9 + $0x60]]
        %v1139 = vstv %s1137
        %v1140 = vmul.f32 %v1139, %v485
        %v1141 = vstv %s1138
        %v1142 = vmul.f32 %v1141, %v486
        %v1143 = vadd.f32 %v1140, %v1142
        %1145 = vrot.lane.b32.xlu0 %v1143, 27
        %v1146 = vpop.permute.xlu0 %1145
        %v1147 = vrot.slane %v1146, 1
        %vm1148 = vcmask 220160
        %v1149 = vsel %vm1148, %v1146, %v1147
        %v1151 = vmul.f32 %v1040, %v1149
        %v1152 = vadd.f32 %v1120, %v1151
        %s1153 = scalar_lea.vmem [#allocation7], 6
        %v1154 = vld [vmem:[%s1153] ss:$8 sm:$0x3]
        %s1155 = sld [smem:[#allocation9 + $0x6]]
        %s1156 = sld [smem:[#allocation9 + $0x37]]
        %v1157 = vstv %s1155
        %v1158 = vmul.f32 %v1157, %v485
        %v1159 = vstv %s1156
        %v1160 = vmul.f32 %v1159, %v486
        %v1161 = vadd.f32 %v1158, %v1160
        %1163 = vrot.lane.b32.xlu0 %v1161, 122
        %v1164 = vpop.permute.xlu0 %1163
        %v1165 = vrot.slane %v1164, 1
        %vm1166 = vcmask 998400
        %v1167 = vsel %vm1166, %v1164, %v1165
        %v1169 = vmul.f32 %v1154, %v1167
        %v1170 = vadd.f32 %v1038, %v1169
        %s1171 = sld [smem:[#allocation9 + $0xd]]
        %s1172 = sld [smem:[#allocation9 + $0x3e]]
        %v1173 = vstv %s1171
        %v1174 = vmul.f32 %v1173, %v485
        %v1175 = vstv %s1172
        %v1176 = vmul.f32 %v1175, %v486
        %v1177 = vadd.f32 %v1174, %v1176
        %1179 = vrot.lane.b32.xlu0 %v1177, 106
        %v1180 = vpop.permute.xlu0 %1179
        %v1181 = vrot.slane %v1180, 1
        %vm1182 = vcmask 867328
        %v1183 = vsel %vm1182, %v1180, %v1181
        %v1185 = vmul.f32 %v1154, %v1183
        %v1186 = vadd.f32 %v1022, %v1185
        %s1187 = sld [smem:[#allocation9 + $0x14]]
        %s1188 = sld [smem:[#allocation9 + $0x45]]
        %v1189 = vstv %s1187
        %v1190 = vmul.f32 %v1189, %v485
        %v1191 = vstv %s1188
        %v1192 = vmul.f32 %v1191, %v486
        %v1193 = vadd.f32 %v1190, %v1192
        %1195 = vrot.lane.b32.xlu0 %v1193, 90
        %v1196 = vpop.permute.xlu0 %1195
        %v1197 = vrot.slane %v1196, 1
        %vm1198 = vcmask 736256
        %v1199 = vsel %vm1198, %v1196, %v1197
        %v1201 = vmul.f32 %v1154, %v1199
        %v1202 = vadd.f32 %v1170, %v1201
        %s1203 = sld [smem:[#allocation9 + $0x1b]]
        %s1204 = sld [smem:[#allocation9 + $0x4c]]
        %v1205 = vstv %s1203
        %v1206 = vmul.f32 %v1205, %v485
        %v1207 = vstv %s1204
        %v1208 = vmul.f32 %v1207, %v486
        %v1209 = vadd.f32 %v1206, %v1208
        %1211 = vrot.lane.b32.xlu0 %v1209, 74
        %v1212 = vpop.permute.xlu0 %1211
        %v1213 = vrot.slane %v1212, 1
        %vm1214 = vcmask 605184
        %v1215 = vsel %vm1214, %v1212, %v1213
        %v1217 = vmul.f32 %v1154, %v1215
        %v1218 = vadd.f32 %v1186, %v1217
        %s1219 = sld [smem:[#allocation9 + $0x22]]
        %s1220 = sld [smem:[#allocation9 + $0x53]]
        %v1221 = vstv %s1219
        %v1222 = vmul.f32 %v1221, %v485
        %v1223 = vstv %s1220
        %v1224 = vmul.f32 %v1223, %v486
        %v1225 = vadd.f32 %v1222, %v1224
        %1227 = vrot.lane.b32.xlu0 %v1225, 58
        %v1228 = vpop.permute.xlu0 %1227
        %v1229 = vrot.slane %v1228, 1
        %vm1230 = vcmask 474112
        %v1231 = vsel %vm1230, %v1228, %v1229
        %v1233 = vmul.f32 %v1154, %v1231
        %v1234 = vadd.f32 %v1202, %v1233
        %s1235 = sld [smem:[#allocation9 + $0x29]]
        %s1236 = sld [smem:[#allocation9 + $0x5a]]
        %v1237 = vstv %s1235
        %v1238 = vmul.f32 %v1237, %v485
        %v1239 = vstv %s1236
        %v1240 = vmul.f32 %v1239, %v486
        %v1241 = vadd.f32 %v1238, %v1240
        %1243 = vrot.lane.b32.xlu0 %v1241, 42
        %v1244 = vpop.permute.xlu0 %1243
        %v1245 = vrot.slane %v1244, 1
        %vm1246 = vcmask 343040
        %v1247 = vsel %vm1246, %v1244, %v1245
        %v1249 = vmul.f32 %v1154, %v1247
        %v1250 = vadd.f32 %v1218, %v1249
        %s1251 = sld [smem:[#allocation9 + $0x30]]
        %s1252 = sld [smem:[#allocation9 + $0x61]]
        %v1253 = vstv %s1251
        %v1254 = vmul.f32 %v1253, %v485
        %v1255 = vstv %s1252
        %v1256 = vmul.f32 %v1255, %v486
        %v1257 = vadd.f32 %v1254, %v1256
        %1259 = vrot.lane.b32.xlu0 %v1257, 26
        %v1260 = vpop.permute.xlu0 %1259
        %v1261 = vrot.slane %v1260, 1
        %vm1262 = vcmask 211968
        %v1263 = vsel %vm1262, %v1260, %v1261
        %v1265 = vmul.f32 %v1154, %v1263
        %v1266 = vadd.f32 %v1234, %v1265
        %v1267 = vadd.f32 %v1266, %v1152
        %v1268 = vadd.f32 %v1250, %v1136
        %v1269 = vadd.f32 %v1267, %v1268
        %v1270 = vxor.u32 %v1269, 2147483648
        %v1271 = vmul.f32 %v1270, 1.442695
        %v1272 = vpow.pop %v1271
        %v1273 = vadd.f32 %v1272, 1.0
        %v1274 = vrcp.pop %v1273
        %v1275 = vmul.f32 %v1273, %v1274
        %v1276 = vsub.f32 1.0, %v1275
        %v1277 = vmul.f32 %v1274, %v1276
        %v1278 = vadd.f32 %v1274, %v1277
        %vm1279 = vweird.f32 %v1273
        %vm1280 = vweird.f32 %v1274
        %vm1281 = vmor %vm1279, %vm1280
        %v1282 = vsel %vm1281, %v1274, %v1278
        %v1283 = vand.u32 2147483647, %v1273
        %vm1284 = vcmp.eq.f32.partialorder %v1283, 8.507059e+37
        %v1285 = vand.u32 %v1273, 2147483648
        %v1286 = vor.u32 1.1754944e-38, %v1285
        %v1287 = vsel %vm1284, %v1286, %v1282
        %v1288 = vmul.f32 1.0, %v1287
        %v1290 = vperm.slane %v1288, 0
        %v1291 = vperm.slane %v1288, 1
        %v1292 = vrot.slane %v1291, 4
        %v1293 = vsel %vm279, %v1290, %v1292
        %v1295 = vmul.f32 %v392, %v1293
        %1296 = vst [vmem:[%s271] sm:$0xff] %v1295
        %s1297 = sand.u32 %s142, 1
        %s1298 = scalar_lea.sflag [#allocation5], %s1297
        %s1299 = sand.u32 %s142, 1
        %s1300 = smul.addr %s1299, 8
        %s1301 = scalar_lea.vmem [#allocation10], %s1300
        // Predicated region
        $region53: #{tpu_custom_call.1} parent=39 // pred_check
          %p1302 = pneg %p152
        $region54: #{tpu_custom_call.1} parent=39 // pred_check_branch
          %1304 = sbr.rel (%p1302) target = $region56
        $region55: #{tpu_custom_call.1} parent=39 // pred_region
          %1306 = vsyncadd %s1298, 0
          %s1307 = smul.addr %s24, 2
          %s1308 = smul.addr %s1307, 4
          %s1309 = scalar_lea.hbm %s5, %s1308
          %s1311 = sshll.u32 %s1301, 4
          %s1312 = int_to_ptr.vmem [resolvable:$true] %s1311
          %s1313 = sshll.u32 %s1309, 4
          %s1314 = int_to_ptr.hbm [resolvable:$true] %s1313
          %1316 = dma.vmem_to_hbm [thread:$0]  %s1312, 128, %s1314, %s1298
        $region56: #{tpu_custom_call.1} parent=39 // pred_fallthru
          _
      $region40: #{tpu_custom_call.1} parent=5 // pred_fallthru
        _
      %p1317 = scmp.le.s32.totalorder 2, %s19
      // Predicated region
      $region57: #{tpu_custom_call.1} parent=5 // pred_check
        %p1318 = pneg %p1317
      $region58: #{tpu_custom_call.1} parent=5 // pred_check_branch
        %1320 = sbr.rel (%p1318) target = $region60
      $region59: #{tpu_custom_call.1} parent=5 // pred_region
        %s1321 = ssub.s32 %s19, 2
        // Predicated region
        $region61: #{tpu_custom_call.1} parent=59 // pred_check
          %p1322 = pneg %p158
        $region62: #{tpu_custom_call.1} parent=59 // pred_check_branch
          %1324 = sbr.rel (%p1322) target = $region64
        $region63: #{tpu_custom_call.1} parent=59 // pred_region
          %s1325 = sand.u32 %s143, 1
          %s1326 = scalar_lea.sflag [#allocation5], %s1325
          %s1327 = sand.u32 %s143, 1
          %s1328 = smul.addr %s1327, 8
          %s1329 = scalar_lea.vmem [#allocation10], %s1328
          %1331 = dma.done %s1326, 128
        $region64: #{tpu_custom_call.1} parent=59 // pred_fallthru
          _
      $region60: #{tpu_custom_call.1} parent=5 // pred_fallthru
        _
    $region6: #{tpu_custom_call.1} parent=1 // loop_footer
      %s23 = sadd.s32 1, %s19
    $region7: #{tpu_custom_call.1} parent=1 // loop_footer_branch
      %18 = sbr.rel target = $region3
    $region8: #{tpu_custom_call.1} parent=1 // loop_exit
      _
    %1332 = vsyncpa [#allocation4], 1
    %s1333 = scalar_lea.sflag [#allocation4], 1
    %1334 = vsyncpa %s1333, 1
    %1335 = vsyncpa [#allocation8], 1
    %1336 = vsyncpa [#allocation5], 1
    %s1337 = scalar_lea.sflag [#allocation5], 1
    %1338 = vsyncpa %s1337, 1
    %1339 = vsyncpa [#allocation6], 1
    %s1340 = scalar_lea.sflag [#allocation6], 1
    %1341 = vsyncpa %s1340, 1

</llo_original>
